<compile_context>
chip_gen: v6e
topology: v6e:2x2x1
jax: 0.10.0
libtpu: 0.0.40
codegen_flags: <defaults>
</compile_context>

<pallas_src>
import functools

import jax
import jax.numpy as jnp
from jax.experimental import pallas as pl
from jax.experimental.pallas import tpu as pltpu

NEG_SLOPE = 0.01        # F.leaky_relu default (the reference calls it with no slope arg)
MXU_K = 128             # target MXU contraction per group-pack (safe on v5e/v6e/v7x)
T_TILE_MAX = 512        # output-time rows per grid step (bounds VMEM for long audio)
VMEM_LIMIT = 48 * 1024 * 1024   # explicit scoped-VMEM ceiling (fits v7x's 64 MiB)


def _round_up(n, m):
    return ((n + m - 1) // m) * m


# --------------------------------------------------------------------------- #
# Pallas kernel: 1D conv, all taps folded into one grid step, f32 accumulation #
# --------------------------------------------------------------------------- #
def _conv1d_kernel(x_ref, w_ref, b_ref, o_ref, *, stride, taps, apply_act):
    # x_ref: (1, stride, L_win, Cin_blk) bf16 phase-decomposed input window
    #        (phase r, index j  ==  x_pad[r + j*stride])
    # w_ref: (1, taps, Cin_blk, Cp_out)  bf16 weights of this channel pack
    # b_ref: (1, 1, Cp_out)              f32 bias of this channel pack
    # o_ref: (1, T_tile, Cp_out)         bf16 output tile (lane-dense, >=128 wide)
    t_tile = o_ref.shape[1]
    acc = jnp.zeros((t_tile, o_ref.shape[2]), jnp.float32)
    for k in range(taps):                         # all taps in one grid step
        r = k % stride                            # phase holding x_pad[t*stride + k]
        q = k // stride                           # offset inside that phase
        xs = x_ref[0, r, pl.ds(q, t_tile), :]     # [T_tile, Cin_blk]
        acc = acc + jnp.dot(xs, w_ref[0, k], preferred_element_type=jnp.float32)
    y = acc + b_ref[0]                            # f32 bias add
    if apply_act:
        y = jnp.where(y > 0, y, NEG_SLOPE * y)    # leaky_relu
    o_ref[0] = y.astype(o_ref.dtype)


@functools.partial(jax.jit,
                   static_argnames=("stride", "padding", "chan_sliced",
                                    "apply_act", "cout"))
def conv1d_pallas(x, wp, bp, *, stride, padding, chan_sliced, apply_act, cout):
    """Conv1d with zero padding.  x: [B, T, Cin]; wp: [n_packs, K, Cin_blk, Cp_out]."""
    B, T, Cin = x.shape
    n_packs, K, cin_blk, cp_out = wp.shape
    csel = 1 if chan_sliced else 0
    cin_pad = n_packs * cin_blk if chan_sliced else cin_blk

    x = x.astype(jnp.bfloat16)
    if Cin < cin_pad:                      # only layer 0 (raw audio, Cin=1)
        x = jnp.pad(x, ((0, 0), (0, 0), (0, cin_pad - Cin)))

    T_pad = T + 2 * padding
    T_out = (T_pad - K) // stride + 1
    T_tile = min(T_TILE_MAX, _round_up(T_out, 8))
    n_t = -(-T_out // T_tile)
    T_out_pad = n_t * T_tile
    halo = (K - 1) // stride
    L_win = T_tile + halo
    need = (n_t - 1) * T_tile + L_win

    # Phase decomposition of the zero-padded signal: phase r, index j == x_pad[r + j*stride],
    # so the kernel only ever needs contiguous (un-strided) slices.
    x_zp = jnp.pad(x, ((0, 0), (padding, padding), (0, 0)))
    phases = []
    for r in range(stride):
        ph = x_zp[:, r::stride, :]
        if ph.shape[1] < need:
            ph = jnp.pad(ph, ((0, 0), (0, need - ph.shape[1]), (0, 0)))
        else:
            ph = ph[:, :need, :]
        phases.append(ph)
    xs = jnp.stack(phases, axis=1)                        # [B, stride, need, C]

    # Overlapping per-time-tile windows (halo duplication <= (K-1)//stride rows per tile).
    idx = (jnp.arange(n_t) * T_tile)[:, None] + jnp.arange(L_win)[None, :]
    xw = xs[:, :, idx, :]                                 # [B, stride, n_t, L_win, C]
    xw = jnp.transpose(xw, (0, 2, 1, 3, 4)).reshape(B * n_t, stride, L_win, cin_pad)

    out = pl.pallas_call(
        functools.partial(_conv1d_kernel, stride=stride, taps=K,
                          apply_act=apply_act),
        out_shape=jax.ShapeDtypeStruct((B, T_out_pad, n_packs * cp_out),
                                       jnp.bfloat16),
        grid_spec=pltpu.PrefetchScalarGridSpec(
            num_scalar_prefetch=0,
            grid=(B, n_packs, n_t),                       # t innermost -> weights resident per pack
            in_specs=[
                pl.BlockSpec((1, stride, L_win, cin_blk),
                             lambda b, p, t: (b * n_t + t, 0, 0, p * csel)),
                pl.BlockSpec((1, K, cin_blk, cp_out),
                             lambda b, p, t: (p, 0, 0, 0)),
                pl.BlockSpec((1, 1, cp_out),
                             lambda b, p, t: (p, 0, 0)),
            ],
            out_specs=pl.BlockSpec((1, T_tile, cp_out),
                                   lambda b, p, t: (b, t, p)),
        ),
        compiler_params=pltpu.CompilerParams(
            dimension_semantics=("parallel", "parallel", "parallel"),
            vmem_limit_bytes=VMEM_LIMIT),
    )(xw, wp, bp)
    return out[:, :T_out, :cout]


# --------------------------------------------------------------------------- #
# AvgPool1d(4, 2, padding=2) as a trivial VPU kernel (no MXU)                  #
# --------------------------------------------------------------------------- #
def _avgpool_kernel(a0_ref, a1_ref, a2_ref, a3_ref, o_ref):
    # Pure VPU adds; the four stride-2 shifted views are laid out by the wrapper.
    o_ref[...] = 0.25 * (a0_ref[...] + a1_ref[...] + a2_ref[...] + a3_ref[...])


@jax.jit
def avg_pool1d_ncl(x_ncl):
    """nn.AvgPool1d(4, 2, padding=2) (count_include_pad=True).  x_ncl: [B, 1, T]."""
    B, _, T = x_ncl.shape
    x = x_ncl[:, 0, :]
    p_out = T // 2 + 1
    xp = jnp.pad(x, ((0, 0), (2, 2)))
    base = jnp.arange(p_out) * 2
    a0, a1, a2, a3 = (xp[:, base + j] for j in range(4))
    y = pl.pallas_call(
        _avgpool_kernel,
        out_shape=jax.ShapeDtypeStruct((B, p_out), x.dtype),
    )(a0, a1, a2, a3)
    return y[:, None, :]


# --------------------------------------------------------------------------- #
# ScaleBlock / MultyScaleDiscriminator wrappers (parameter packing is glue JAX) #
# --------------------------------------------------------------------------- #
CONV_CFGS = [
    # (Cin, Cout, K, stride, groups, padding)
    (1, 128, 15, 1, 1, 7),
    (128, 256, 41, 2, 16, 20),
    (256, 512, 41, 4, 16, 20),
    (512, 1024, 41, 4, 16, 20),
    (1024, 1024, 41, 1, 16, 20),
    (1024, 1024, 5, 1, 1, 2),
]
POST_CFG = (1024, 1, 3, 1, 1, 1)


def _pack_grouped(w, b, groups):
    """Torch grouped Conv1d weight [Cout, Cig, K] -> packed [n_packs, K, P*Cig, P*Cog].

    P groups are packed per MXU matmul (block-diagonal only inside the pack),
    targeting a ~128-deep contraction; output group g consumes input channels
    [g*Cig:(g+1)*Cig] exactly as in PyTorch.
    """
    Cout, Cig, K = w.shape
    Cog = Cout // groups
    P = max(1, min(groups, MXU_K // max(Cig, 1)))
    while groups % P:
        P -= 1
    n_packs = groups // P
    wt = jnp.transpose(w, (2, 0, 1)).reshape(K, groups, Cog, Cig)
    wt = jnp.transpose(wt, (0, 1, 3, 2)).reshape(K, n_packs, P, Cig, Cog)
    eye = jnp.eye(P, dtype=w.dtype)
    wp = jnp.einsum('knpio,pq->knpiqo', wt, eye)          # block-diag inside each pack
    wp = wp.reshape(K, n_packs, P * Cig, P * Cog)
    wp = jnp.transpose(wp, (1, 0, 2, 3))                  # [n_packs, K, Cp_in, Cp_out]
    bp = b.reshape(n_packs, 1, P * Cog)
    return wp, bp, True


def _pack_dense(w, b):
    """Dense Conv1d weight [Cout, Cin, K] -> output-channel tiles [n_packs, K, Cin_pad, Cp_out]."""
    Cout, Cin, K = w.shape
    cin_pad = Cin if Cin >= 8 else 8                      # sublane-friendly min width
    cp_out = 128 if Cout <= 128 else 256                  # lane-dense output tiles
    cout_pad = _round_up(Cout, cp_out)                    # conv_post: 1 -> 128 lanes
    n_packs = cout_pad // cp_out
    wd = jnp.transpose(w, (2, 1, 0))                      # [K, Cin, Cout]
    wd = jnp.pad(wd, ((0, 0), (0, cin_pad - Cin), (0, cout_pad - Cout)))
    wp = jnp.transpose(wd.reshape(K, cin_pad, n_packs, cp_out), (2, 0, 1, 3))
    bp = jnp.pad(b, (0, cout_pad - Cout)).reshape(n_packs, 1, cp_out)
    return wp, bp, False


def init_scale_block(key):
    # TODO(synk): weight_norm / spectral_norm are reparametrizations of the effective
    # conv weight; effective weights are initialized directly (no power iteration).
    params = []
    for cin, cout, k, stride, groups, pad in CONV_CFGS + [POST_CFG]:
        key, wk, bk = jax.random.split(key, 3)
        cig = cin // groups
        bound = 1.0 / float((cig * k) ** 0.5)
        w = jax.random.uniform(wk, (cout, cig, k), jnp.float32, -bound, bound)
        b = jax.random.uniform(bk, (cout,), jnp.float32, -bound, bound)
        wp, bp, sliced = (_pack_grouped(w, b, groups) if groups > 1
                          else _pack_dense(w, b))
        params.append(dict(wp=wp.astype(jnp.bfloat16), bp=bp.astype(jnp.float32),
                           stride=stride, padding=pad, chan_sliced=sliced,
                           cout=cout))
    return params


def scale_block_forward(params, x_ncl):
    """x_ncl: [B, 1, T] (NCL).  Returns (x, fmap) with NCL f32 tensors like torch."""
    x = jnp.transpose(x_ncl, (0, 2, 1))                   # internal NTC layout
    fmap = []
    n = len(params)
    for i, lp in enumerate(params):
        is_post = (i == n - 1)
        x = conv1d_pallas(x, lp["wp"], lp["bp"],
                          stride=lp["stride"], padding=lp["padding"],
                          chan_sliced=lp["chan_sliced"],
                          apply_act=not is_post, cout=lp["cout"])
        fmap.append(jnp.transpose(x, (0, 2, 1)).astype(jnp.float32))
    return fmap[-1], fmap


def msd_forward(params_list, audio, pred_audio):
    """Faithful forward of MultyScaleDiscriminator. audio/pred_audio: [B, 1, T]."""
    prob_a, hist_a = scale_block_forward(params_list[0], audio)
    prob_p, hist_p = scale_block_forward(params_list[0], pred_audio)
    lst_prob_a, lst_prob_p = [prob_a], [prob_p]
    lst_hist_a, lst_hist_p = [hist_a], [hist_p]
    # Faithful to the reference: `audio` is never reassigned, so every pooling acts
    # on the ORIGINAL audio; both AvgPool1d modules are identical, so the pooled
    # signal is computed once and reused (numerically identical).
    pooled_a = avg_pool1d_ncl(audio)
    pooled_p = avg_pool1d_ncl(pred_audio)
    for disc_params in params_list[1:]:
        prob_a, hist_a = scale_block_forward(disc_params, pooled_a)
        prob_p, hist_p = scale_block_forward(disc_params, pooled_p)
        lst_prob_a.append(prob_a)
        lst_prob_p.append(prob_p)
        lst_hist_a.append(hist_a)
        lst_hist_p.append(hist_p)
    return lst_prob_a, lst_prob_p, lst_hist_a, lst_hist_p


if __name__ == "__main__":
    key = jax.random.PRNGKey(0)
    k_a, k_p, k0, k1, k2 = jax.random.split(key, 5)
    B, T = 2, 64
    audio = jax.random.normal(k_a, (B, 1, T), jnp.float32)
    pred_audio = jax.random.normal(k_p, (B, 1, T), jnp.float32)

    params = [init_scale_block(k0), init_scale_block(k1), init_scale_block(k2)]

    out = msd_forward(params, audio, pred_audio)
    out = jax.block_until_ready(out)

    lst_prob_a, lst_prob_p, lst_hist_a, lst_hist_p = out
    assert len(lst_prob_a) == 3 and len(lst_hist_a) == 3
    assert lst_prob_a[0].shape == (B, 1, 2)        # T=64 chain: post output len 2
    assert lst_prob_a[1].shape == (B, 1, 2)        # pooled T=33 chain
    assert lst_hist_a[0][0].shape == (B, 128, 64)  # first conv feature map
    print("KERNEL_OK")
</pallas_src>

<mosaic_0001>
module attributes {stable_mosaic.version = 11 : i64} {
  func.func @_conv1d_kernel(%arg0: i32, %arg1: i32, %arg2: i32, %arg3: memref<1x1x78x8xbf16, #tpu.memory_space<vmem>>, %arg4: memref<1x15x8x128xbf16, #tpu.memory_space<vmem>>, %arg5: memref<1x1x128xf32, #tpu.memory_space<vmem>>, %arg6: memref<1x64x128xbf16, #tpu.memory_space<vmem>>) attributes {dimension_semantics = [#tpu.dimension_semantics<parallel>, #tpu.dimension_semantics<parallel>, #tpu.dimension_semantics<parallel>], iteration_bounds = array<i64: 2, 1, 1>, scalar_prefetch = 0 : i64, scratch_operands = 0 : i64, tpu.core_type = #tpu.core_type<tc>, window_params = [{transform_indices = @transform_0, window_bounds = array<i64: 1, 1, 78, 8>}, {transform_indices = @transform_1, window_bounds = array<i64: 1, 15, 8, 128>}, {transform_indices = @transform_2, window_bounds = array<i64: 1, 1, 128>}, {transform_indices = @transform_3, window_bounds = array<i64: 1, 64, 128>}]} {
    %cst = arith.constant 0.000000e+00 : f32
    %0 = vector.broadcast %cst : f32 to vector<64x128xf32>
    %c0 = arith.constant 0 : index
    %c0_0 = arith.constant 0 : index
    %c0_1 = arith.constant 0 : index
    %c0_2 = arith.constant 0 : index
    %1 = vector.load %arg3[%c0, %c0_0, %c0_1, %c0_2] : memref<1x1x78x8xbf16, #tpu.memory_space<vmem>>, vector<1x1x64x8xbf16>
    %2 = vector.shape_cast %1 : vector<1x1x64x8xbf16> to vector<64x8xbf16>
    %c0_3 = arith.constant 0 : index
    %c0_4 = arith.constant 0 : index
    %c0_5 = arith.constant 0 : index
    %c0_6 = arith.constant 0 : index
    %3 = vector.load %arg4[%c0_3, %c0_4, %c0_5, %c0_6] : memref<1x15x8x128xbf16, #tpu.memory_space<vmem>>, vector<1x1x8x128xbf16>
    %4 = vector.shape_cast %3 : vector<1x1x8x128xbf16> to vector<8x128xbf16>
    %cst_7 = arith.constant dense<0.000000e+00> : vector<64x128xf32>
    %5 = tpu.matmul %2, %4, %cst_7 {dimension_numbers = #tpu.dot_dimension_numbers<[1], [0], [0], [1], [0, 0, 1, 1], [], []>} : vector<64x8xbf16>, vector<8x128xbf16>, vector<64x128xf32> -> vector<64x128xf32>
    %6 = arith.addf %0, %5 : vector<64x128xf32>
    %c0_8 = arith.constant 0 : index
    %c0_9 = arith.constant 0 : index
    %c1 = arith.constant 1 : index
    %c0_10 = arith.constant 0 : index
    %7 = vector.load %arg3[%c0_8, %c0_9, %c1, %c0_10] : memref<1x1x78x8xbf16, #tpu.memory_space<vmem>>, vector<1x1x64x8xbf16>
    %8 = vector.shape_cast %7 : vector<1x1x64x8xbf16> to vector<64x8xbf16>
    %c0_11 = arith.constant 0 : index
    %c1_12 = arith.constant 1 : index
    %c0_13 = arith.constant 0 : index
    %c0_14 = arith.constant 0 : index
    %9 = vector.load %arg4[%c0_11, %c1_12, %c0_13, %c0_14] : memref<1x15x8x128xbf16, #tpu.memory_space<vmem>>, vector<1x1x8x128xbf16>
    %10 = vector.shape_cast %9 : vector<1x1x8x128xbf16> to vector<8x128xbf16>
    %cst_15 = arith.constant dense<0.000000e+00> : vector<64x128xf32>
    %11 = tpu.matmul %8, %10, %cst_15 {dimension_numbers = #tpu.dot_dimension_numbers<[1], [0], [0], [1], [0, 0, 1, 1], [], []>} : vector<64x8xbf16>, vector<8x128xbf16>, vector<64x128xf32> -> vector<64x128xf32>
    %12 = arith.addf %6, %11 : vector<64x128xf32>
    %c0_16 = arith.constant 0 : index
    %c0_17 = arith.constant 0 : index
    %c2 = arith.constant 2 : index
    %c0_18 = arith.constant 0 : index
    %13 = vector.load %arg3[%c0_16, %c0_17, %c2, %c0_18] : memref<1x1x78x8xbf16, #tpu.memory_space<vmem>>, vector<1x1x64x8xbf16>
    %14 = vector.shape_cast %13 : vector<1x1x64x8xbf16> to vector<64x8xbf16>
    %c0_19 = arith.constant 0 : index
    %c2_20 = arith.constant 2 : index
    %c0_21 = arith.constant 0 : index
    %c0_22 = arith.constant 0 : index
    %15 = vector.load %arg4[%c0_19, %c2_20, %c0_21, %c0_22] : memref<1x15x8x128xbf16, #tpu.memory_space<vmem>>, vector<1x1x8x128xbf16>
    %16 = vector.shape_cast %15 : vector<1x1x8x128xbf16> to vector<8x128xbf16>
    %cst_23 = arith.constant dense<0.000000e+00> : vector<64x128xf32>
    %17 = tpu.matmul %14, %16, %cst_23 {dimension_numbers = #tpu.dot_dimension_numbers<[1], [0], [0], [1], [0, 0, 1, 1], [], []>} : vector<64x8xbf16>, vector<8x128xbf16>, vector<64x128xf32> -> vector<64x128xf32>
    %18 = arith.addf %12, %17 : vector<64x128xf32>
    %c0_24 = arith.constant 0 : index
    %c0_25 = arith.constant 0 : index
    %c3 = arith.constant 3 : index
    %c0_26 = arith.constant 0 : index
    %19 = vector.load %arg3[%c0_24, %c0_25, %c3, %c0_26] : memref<1x1x78x8xbf16, #tpu.memory_space<vmem>>, vector<1x1x64x8xbf16>
    %20 = vector.shape_cast %19 : vector<1x1x64x8xbf16> to vector<64x8xbf16>
    %c0_27 = arith.constant 0 : index
    %c3_28 = arith.constant 3 : index
    %c0_29 = arith.constant 0 : index
    %c0_30 = arith.constant 0 : index
    %21 = vector.load %arg4[%c0_27, %c3_28, %c0_29, %c0_30] : memref<1x15x8x128xbf16, #tpu.memory_space<vmem>>, vector<1x1x8x128xbf16>
    %22 = vector.shape_cast %21 : vector<1x1x8x128xbf16> to vector<8x128xbf16>
    %cst_31 = arith.constant dense<0.000000e+00> : vector<64x128xf32>
    %23 = tpu.matmul %20, %22, %cst_31 {dimension_numbers = #tpu.dot_dimension_numbers<[1], [0], [0], [1], [0, 0, 1, 1], [], []>} : vector<64x8xbf16>, vector<8x128xbf16>, vector<64x128xf32> -> vector<64x128xf32>
    %24 = arith.addf %18, %23 : vector<64x128xf32>
    %c0_32 = arith.constant 0 : index
    %c0_33 = arith.constant 0 : index
    %c4 = arith.constant 4 : index
    %c0_34 = arith.constant 0 : index
    %25 = vector.load %arg3[%c0_32, %c0_33, %c4, %c0_34] : memref<1x1x78x8xbf16, #tpu.memory_space<vmem>>, vector<1x1x64x8xbf16>
    %26 = vector.shape_cast %25 : vector<1x1x64x8xbf16> to vector<64x8xbf16>
    %c0_35 = arith.constant 0 : index
    %c4_36 = arith.constant 4 : index
    %c0_37 = arith.constant 0 : index
    %c0_38 = arith.constant 0 : index
    %27 = vector.load %arg4[%c0_35, %c4_36, %c0_37, %c0_38] : memref<1x15x8x128xbf16, #tpu.memory_space<vmem>>, vector<1x1x8x128xbf16>
    %28 = vector.shape_cast %27 : vector<1x1x8x128xbf16> to vector<8x128xbf16>
    %cst_39 = arith.constant dense<0.000000e+00> : vector<64x128xf32>
    %29 = tpu.matmul %26, %28, %cst_39 {dimension_numbers = #tpu.dot_dimension_numbers<[1], [0], [0], [1], [0, 0, 1, 1], [], []>} : vector<64x8xbf16>, vector<8x128xbf16>, vector<64x128xf32> -> vector<64x128xf32>
    %30 = arith.addf %24, %29 : vector<64x128xf32>
    %c0_40 = arith.constant 0 : index
    %c0_41 = arith.constant 0 : index
    %c5 = arith.constant 5 : index
    %c0_42 = arith.constant 0 : index
    %31 = vector.load %arg3[%c0_40, %c0_41, %c5, %c0_42] : memref<1x1x78x8xbf16, #tpu.memory_space<vmem>>, vector<1x1x64x8xbf16>
    %32 = vector.shape_cast %31 : vector<1x1x64x8xbf16> to vector<64x8xbf16>
    %c0_43 = arith.constant 0 : index
    %c5_44 = arith.constant 5 : index
    %c0_45 = arith.constant 0 : index
    %c0_46 = arith.constant 0 : index
    %33 = vector.load %arg4[%c0_43, %c5_44, %c0_45, %c0_46] : memref<1x15x8x128xbf16, #tpu.memory_space<vmem>>, vector<1x1x8x128xbf16>
    %34 = vector.shape_cast %33 : vector<1x1x8x128xbf16> to vector<8x128xbf16>
    %cst_47 = arith.constant dense<0.000000e+00> : vector<64x128xf32>
    %35 = tpu.matmul %32, %34, %cst_47 {dimension_numbers = #tpu.dot_dimension_numbers<[1], [0], [0], [1], [0, 0, 1, 1], [], []>} : vector<64x8xbf16>, vector<8x128xbf16>, vector<64x128xf32> -> vector<64x128xf32>
    %36 = arith.addf %30, %35 : vector<64x128xf32>
    %c0_48 = arith.constant 0 : index
    %c0_49 = arith.constant 0 : index
    %c6 = arith.constant 6 : index
    %c0_50 = arith.constant 0 : index
    %37 = vector.load %arg3[%c0_48, %c0_49, %c6, %c0_50] : memref<1x1x78x8xbf16, #tpu.memory_space<vmem>>, vector<1x1x64x8xbf16>
    %38 = vector.shape_cast %37 : vector<1x1x64x8xbf16> to vector<64x8xbf16>
    %c0_51 = arith.constant 0 : index
    %c6_52 = arith.constant 6 : index
    %c0_53 = arith.constant 0 : index
    %c0_54 = arith.constant 0 : index
    %39 = vector.load %arg4[%c0_51, %c6_52, %c0_53, %c0_54] : memref<1x15x8x128xbf16, #tpu.memory_space<vmem>>, vector<1x1x8x128xbf16>
    %40 = vector.shape_cast %39 : vector<1x1x8x128xbf16> to vector<8x128xbf16>
    %cst_55 = arith.constant dense<0.000000e+00> : vector<64x128xf32>
    %41 = tpu.matmul %38, %40, %cst_55 {dimension_numbers = #tpu.dot_dimension_numbers<[1], [0], [0], [1], [0, 0, 1, 1], [], []>} : vector<64x8xbf16>, vector<8x128xbf16>, vector<64x128xf32> -> vector<64x128xf32>
    %42 = arith.addf %36, %41 : vector<64x128xf32>
    %c0_56 = arith.constant 0 : index
    %c0_57 = arith.constant 0 : index
    %c7 = arith.constant 7 : index
    %c0_58 = arith.constant 0 : index
    %43 = vector.load %arg3[%c0_56, %c0_57, %c7, %c0_58] : memref<1x1x78x8xbf16, #tpu.memory_space<vmem>>, vector<1x1x64x8xbf16>
    %44 = vector.shape_cast %43 : vector<1x1x64x8xbf16> to vector<64x8xbf16>
    %c0_59 = arith.constant 0 : index
    %c7_60 = arith.constant 7 : index
    %c0_61 = arith.constant 0 : index
    %c0_62 = arith.constant 0 : index
    %45 = vector.load %arg4[%c0_59, %c7_60, %c0_61, %c0_62] : memref<1x15x8x128xbf16, #tpu.memory_space<vmem>>, vector<1x1x8x128xbf16>
    %46 = vector.shape_cast %45 : vector<1x1x8x128xbf16> to vector<8x128xbf16>
    %cst_63 = arith.constant dense<0.000000e+00> : vector<64x128xf32>
    %47 = tpu.matmul %44, %46, %cst_63 {dimension_numbers = #tpu.dot_dimension_numbers<[1], [0], [0], [1], [0, 0, 1, 1], [], []>} : vector<64x8xbf16>, vector<8x128xbf16>, vector<64x128xf32> -> vector<64x128xf32>
    %48 = arith.addf %42, %47 : vector<64x128xf32>
    %c0_64 = arith.constant 0 : index
    %c0_65 = arith.constant 0 : index
    %c8 = arith.constant 8 : index
    %c0_66 = arith.constant 0 : index
    %49 = vector.load %arg3[%c0_64, %c0_65, %c8, %c0_66] : memref<1x1x78x8xbf16, #tpu.memory_space<vmem>>, vector<1x1x64x8xbf16>
    %50 = vector.shape_cast %49 : vector<1x1x64x8xbf16> to vector<64x8xbf16>
    %c0_67 = arith.constant 0 : index
    %c8_68 = arith.constant 8 : index
    %c0_69 = arith.constant 0 : index
    %c0_70 = arith.constant 0 : index
    %51 = vector.load %arg4[%c0_67, %c8_68, %c0_69, %c0_70] : memref<1x15x8x128xbf16, #tpu.memory_space<vmem>>, vector<1x1x8x128xbf16>
    %52 = vector.shape_cast %51 : vector<1x1x8x128xbf16> to vector<8x128xbf16>
    %cst_71 = arith.constant dense<0.000000e+00> : vector<64x128xf32>
    %53 = tpu.matmul %50, %52, %cst_71 {dimension_numbers = #tpu.dot_dimension_numbers<[1], [0], [0], [1], [0, 0, 1, 1], [], []>} : vector<64x8xbf16>, vector<8x128xbf16>, vector<64x128xf32> -> vector<64x128xf32>
    %54 = arith.addf %48, %53 : vector<64x128xf32>
    %c0_72 = arith.constant 0 : index
    %c0_73 = arith.constant 0 : index
    %c9 = arith.constant 9 : index
    %c0_74 = arith.constant 0 : index
    %55 = vector.load %arg3[%c0_72, %c0_73, %c9, %c0_74] : memref<1x1x78x8xbf16, #tpu.memory_space<vmem>>, vector<1x1x64x8xbf16>
    %56 = vector.shape_cast %55 : vector<1x1x64x8xbf16> to vector<64x8xbf16>
    %c0_75 = arith.constant 0 : index
    %c9_76 = arith.constant 9 : index
    %c0_77 = arith.constant 0 : index
    %c0_78 = arith.constant 0 : index
    %57 = vector.load %arg4[%c0_75, %c9_76, %c0_77, %c0_78] : memref<1x15x8x128xbf16, #tpu.memory_space<vmem>>, vector<1x1x8x128xbf16>
    %58 = vector.shape_cast %57 : vector<1x1x8x128xbf16> to vector<8x128xbf16>
    %cst_79 = arith.constant dense<0.000000e+00> : vector<64x128xf32>
    %59 = tpu.matmul %56, %58, %cst_79 {dimension_numbers = #tpu.dot_dimension_numbers<[1], [0], [0], [1], [0, 0, 1, 1], [], []>} : vector<64x8xbf16>, vector<8x128xbf16>, vector<64x128xf32> -> vector<64x128xf32>
    %60 = arith.addf %54, %59 : vector<64x128xf32>
    %c0_80 = arith.constant 0 : index
    %c0_81 = arith.constant 0 : index
    %c10 = arith.constant 10 : index
    %c0_82 = arith.constant 0 : index
    %61 = vector.load %arg3[%c0_80, %c0_81, %c10, %c0_82] : memref<1x1x78x8xbf16, #tpu.memory_space<vmem>>, vector<1x1x64x8xbf16>
    %62 = vector.shape_cast %61 : vector<1x1x64x8xbf16> to vector<64x8xbf16>
    %c0_83 = arith.constant 0 : index
    %c10_84 = arith.constant 10 : index
    %c0_85 = arith.constant 0 : index
    %c0_86 = arith.constant 0 : index
    %63 = vector.load %arg4[%c0_83, %c10_84, %c0_85, %c0_86] : memref<1x15x8x128xbf16, #tpu.memory_space<vmem>>, vector<1x1x8x128xbf16>
    %64 = vector.shape_cast %63 : vector<1x1x8x128xbf16> to vector<8x128xbf16>
    %cst_87 = arith.constant dense<0.000000e+00> : vector<64x128xf32>
    %65 = tpu.matmul %62, %64, %cst_87 {dimension_numbers = #tpu.dot_dimension_numbers<[1], [0], [0], [1], [0, 0, 1, 1], [], []>} : vector<64x8xbf16>, vector<8x128xbf16>, vector<64x128xf32> -> vector<64x128xf32>
    %66 = arith.addf %60, %65 : vector<64x128xf32>
    %c0_88 = arith.constant 0 : index
    %c0_89 = arith.constant 0 : index
    %c11 = arith.constant 11 : index
    %c0_90 = arith.constant 0 : index
    %67 = vector.load %arg3[%c0_88, %c0_89, %c11, %c0_90] : memref<1x1x78x8xbf16, #tpu.memory_space<vmem>>, vector<1x1x64x8xbf16>
    %68 = vector.shape_cast %67 : vector<1x1x64x8xbf16> to vector<64x8xbf16>
    %c0_91 = arith.constant 0 : index
    %c11_92 = arith.constant 11 : index
    %c0_93 = arith.constant 0 : index
    %c0_94 = arith.constant 0 : index
    %69 = vector.load %arg4[%c0_91, %c11_92, %c0_93, %c0_94] : memref<1x15x8x128xbf16, #tpu.memory_space<vmem>>, vector<1x1x8x128xbf16>
    %70 = vector.shape_cast %69 : vector<1x1x8x128xbf16> to vector<8x128xbf16>
    %cst_95 = arith.constant dense<0.000000e+00> : vector<64x128xf32>
    %71 = tpu.matmul %68, %70, %cst_95 {dimension_numbers = #tpu.dot_dimension_numbers<[1], [0], [0], [1], [0, 0, 1, 1], [], []>} : vector<64x8xbf16>, vector<8x128xbf16>, vector<64x128xf32> -> vector<64x128xf32>
    %72 = arith.addf %66, %71 : vector<64x128xf32>
    %c0_96 = arith.constant 0 : index
    %c0_97 = arith.constant 0 : index
    %c12 = arith.constant 12 : index
    %c0_98 = arith.constant 0 : index
    %73 = vector.load %arg3[%c0_96, %c0_97, %c12, %c0_98] : memref<1x1x78x8xbf16, #tpu.memory_space<vmem>>, vector<1x1x64x8xbf16>
    %74 = vector.shape_cast %73 : vector<1x1x64x8xbf16> to vector<64x8xbf16>
    %c0_99 = arith.constant 0 : index
    %c12_100 = arith.constant 12 : index
    %c0_101 = arith.constant 0 : index
    %c0_102 = arith.constant 0 : index
    %75 = vector.load %arg4[%c0_99, %c12_100, %c0_101, %c0_102] : memref<1x15x8x128xbf16, #tpu.memory_space<vmem>>, vector<1x1x8x128xbf16>
    %76 = vector.shape_cast %75 : vector<1x1x8x128xbf16> to vector<8x128xbf16>
    %cst_103 = arith.constant dense<0.000000e+00> : vector<64x128xf32>
    %77 = tpu.matmul %74, %76, %cst_103 {dimension_numbers = #tpu.dot_dimension_numbers<[1], [0], [0], [1], [0, 0, 1, 1], [], []>} : vector<64x8xbf16>, vector<8x128xbf16>, vector<64x128xf32> -> vector<64x128xf32>
    %78 = arith.addf %72, %77 : vector<64x128xf32>
    %c0_104 = arith.constant 0 : index
    %c0_105 = arith.constant 0 : index
    %c13 = arith.constant 13 : index
    %c0_106 = arith.constant 0 : index
    %79 = vector.load %arg3[%c0_104, %c0_105, %c13, %c0_106] : memref<1x1x78x8xbf16, #tpu.memory_space<vmem>>, vector<1x1x64x8xbf16>
    %80 = vector.shape_cast %79 : vector<1x1x64x8xbf16> to vector<64x8xbf16>
    %c0_107 = arith.constant 0 : index
    %c13_108 = arith.constant 13 : index
    %c0_109 = arith.constant 0 : index
    %c0_110 = arith.constant 0 : index
    %81 = vector.load %arg4[%c0_107, %c13_108, %c0_109, %c0_110] : memref<1x15x8x128xbf16, #tpu.memory_space<vmem>>, vector<1x1x8x128xbf16>
    %82 = vector.shape_cast %81 : vector<1x1x8x128xbf16> to vector<8x128xbf16>
    %cst_111 = arith.constant dense<0.000000e+00> : vector<64x128xf32>
    %83 = tpu.matmul %80, %82, %cst_111 {dimension_numbers = #tpu.dot_dimension_numbers<[1], [0], [0], [1], [0, 0, 1, 1], [], []>} : vector<64x8xbf16>, vector<8x128xbf16>, vector<64x128xf32> -> vector<64x128xf32>
    %84 = arith.addf %78, %83 : vector<64x128xf32>
    %c0_112 = arith.constant 0 : index
    %c0_113 = arith.constant 0 : index
    %c14 = arith.constant 14 : index
    %c0_114 = arith.constant 0 : index
    %85 = vector.load %arg3[%c0_112, %c0_113, %c14, %c0_114] : memref<1x1x78x8xbf16, #tpu.memory_space<vmem>>, vector<1x1x64x8xbf16>
    %86 = vector.shape_cast %85 : vector<1x1x64x8xbf16> to vector<64x8xbf16>
    %c0_115 = arith.constant 0 : index
    %c14_116 = arith.constant 14 : index
    %c0_117 = arith.constant 0 : index
    %c0_118 = arith.constant 0 : index
    %87 = vector.load %arg4[%c0_115, %c14_116, %c0_117, %c0_118] : memref<1x15x8x128xbf16, #tpu.memory_space<vmem>>, vector<1x1x8x128xbf16>
    %88 = vector.shape_cast %87 : vector<1x1x8x128xbf16> to vector<8x128xbf16>
    %cst_119 = arith.constant dense<0.000000e+00> : vector<64x128xf32>
    %89 = tpu.matmul %86, %88, %cst_119 {dimension_numbers = #tpu.dot_dimension_numbers<[1], [0], [0], [1], [0, 0, 1, 1], [], []>} : vector<64x8xbf16>, vector<8x128xbf16>, vector<64x128xf32> -> vector<64x128xf32>
    %90 = arith.addf %84, %89 : vector<64x128xf32>
    %c0_120 = arith.constant 0 : index
    %c0_121 = arith.constant 0 : index
    %c0_122 = arith.constant 0 : index
    %91 = vector.load %arg5[%c0_120, %c0_121, %c0_122] : memref<1x1x128xf32, #tpu.memory_space<vmem>>, vector<1x1x128xf32>
    %92 = vector.shape_cast %91 : vector<1x1x128xf32> to vector<1x128xf32>
    %93 = vector.broadcast %92 : vector<1x128xf32> to vector<64x128xf32>
    %94 = arith.addf %90, %93 : vector<64x128xf32>
    %cst_123 = arith.constant 0.000000e+00 : f32
    %95 = vector.broadcast %cst_123 : f32 to vector<64x128xf32>
    %96 = arith.cmpf ogt, %94, %95 : vector<64x128xf32>
    %cst_124 = arith.constant 0.00999999977 : f32
    %97 = vector.broadcast %cst_124 : f32 to vector<64x128xf32>
    %98 = arith.mulf %97, %94 : vector<64x128xf32>
    %99 = arith.select %96, %94, %98 : vector<64x128xi1>, vector<64x128xf32>
    %100 = arith.truncf %99 : vector<64x128xf32> to vector<64x128xbf16>
    %c0_125 = arith.constant 0 : index
    %c0_126 = arith.constant 0 : index
    %c0_127 = arith.constant 0 : index
    %101 = vector.load %arg6[%c0_125, %c0_126, %c0_127] : memref<1x64x128xbf16, #tpu.memory_space<vmem>>, vector<1x64x128xbf16>
    %102 = vector.shape_cast %101 : vector<1x64x128xbf16> to vector<64x128xbf16>
    %103 = vector.shape_cast %100 : vector<64x128xbf16> to vector<1x64x128xbf16>
    tpu.vector_store %arg6[%c0_125, %c0_126, %c0_127], %103 {strides = array<i32>} : memref<1x64x128xbf16, #tpu.memory_space<vmem>>, vector<1x64x128xbf16>,
    return
  }
  func.func @transform_0(%arg0: i32, %arg1: i32, %arg2: i32) -> (i32, i32, i32, i32) {
    %c1_i32 = arith.constant 1 : i32
    %0 = arith.muli %arg0, %c1_i32 : i32
    %1 = arith.addi %0, %arg2 : i32
    %c0_i32 = arith.constant 0 : i32
    %2 = arith.muli %arg1, %c0_i32 : i32
    %c0_i32_0 = arith.constant 0 : i32
    %c0_i32_1 = arith.constant 0 : i32
    %c0_i32_2 = arith.constant 0 : i32
    return %1, %c0_i32_0, %c0_i32_1, %2 : i32, i32, i32, i32
  }
  func.func @transform_1(%arg0: i32, %arg1: i32, %arg2: i32) -> (i32, i32, i32, i32) {
    %c0_i32 = arith.constant 0 : i32
    %c0_i32_0 = arith.constant 0 : i32
    %c0_i32_1 = arith.constant 0 : i32
    %c0_i32_2 = arith.constant 0 : i32
    return %arg1, %c0_i32, %c0_i32_0, %c0_i32_1 : i32, i32, i32, i32
  }
  func.func @transform_2(%arg0: i32, %arg1: i32, %arg2: i32) -> (i32, i32, i32) {
    %c0_i32 = arith.constant 0 : i32
    %c0_i32_0 = arith.constant 0 : i32
    %c0_i32_1 = arith.constant 0 : i32
    return %arg1, %c0_i32, %c0_i32_0 : i32, i32, i32
  }
  func.func @transform_3(%arg0: i32, %arg1: i32, %arg2: i32) -> (i32, i32, i32) {
    %c0_i32 = arith.constant 0 : i32
    return %arg0, %arg2, %arg1 : i32, i32, i32
  }
}

</mosaic_0001>

<llo_original>
// kernel: conv1d_pallas.1
$region0: #{conv1d_pallas.1}
  #allocation0 [shape = 'u32[]', space=smem, size = 0x4, offset = 0x4, fixed_abs, tag = 'smem constant byte address 0x4 - core index']
  #allocation1 [shape = 'u32[144,128]{1,0:T(1,128)}', space=vmem, size = 0x12000, scoped, tag = 'internal scratch']
  %s0 = inlined_call_operand.vmem [shape: bf16[2,1,78,8], index: 0, kind: input, shape index: {}]
  %s1 = inlined_call_operand.vmem [shape: bf16[1,15,8,128], index: 1, kind: input, shape index: {}]
  %s2 = inlined_call_operand.vmem [shape: f32[1,1,128], index: 2, kind: input, shape index: {}]
  %s3 = inlined_call_operand.hbm [shape: bf16[2,64,128], index: 3, kind: output, shape index: {}]
  %s4 = sld [smem:[#allocation0]]
  $region45: #{conv1d_pallas.1} parent=0
    _
  %s6 = ssub.s32 1, %s4
  %s7 = scalar_select 0, %s6, %s4
  $region1: #{conv1d_pallas.1} parent=0
    #allocation2 [shape = 'u8[32768]{0}', space=vmem, size = 0x8000, scoped, tag = 'output window, operand 0']
    #allocation3 [shape = 's32[2]{0}', space=sflag, size = 0x8, scoped, tag = 'scoped memory for conv1d_pallas.1']
    %8 = vsyncpa [#allocation3], 0
    %s9 = scalar_lea.sflag [#allocation3], 1
    %10 = vsyncpa %s9, 0
    loop: start=0, step=1, limit=4
    $region2: #{conv1d_pallas.1} parent=1 // loop_pre_header
      _
    $region3: #{conv1d_pallas.1} parent=1 // loop_header
      %s12 = sphi 0, %s16
      %p13 = scmp.ge.s32.totalorder %s12, 4
      %s19 = sphi 0, %s38
      %s20 = sphi 0, %s34
      %s21 = sphi 0, %s30
      %s22 = sphi 0, %s19
      %s23 = sphi 0, %s20
      %s24 = sphi 0, %s21
      %s25 = sphi 0, %s22
      %s26 = sphi 0, %s23
      %s27 = sphi 0, %s24
      %s43 = sphi 0, %s45
      %s46 = sphi 0, %s43
      %s47 = sphi 0, %s46
      %s63 = sphi 0, %s47
      %s69 = sphi 0, %s71
      %s72 = sphi 0, %s69
      %s73 = sphi 0, %s72
      %s89 = sphi 0, %s73
      %s95 = sphi 0, %s97
      %s98 = sphi 0, %s95
      %s99 = sphi 0, %s98
      %s115 = sphi 0, %s99
      %s125 = sphi 0, %s127
      %s128 = sphi 0, %s125
      %s129 = sphi 0, %s128
      %s145 = sphi 0, %s129
    $region4: #{conv1d_pallas.1} parent=1 // loop_header_branch
      %15 = sbr.rel (%p13) target = $region8
    $region5: #{conv1d_pallas.1} parent=1 // loop_body
      %s17 = ssub.s32 %s12, 1
      %s18 = ssub.s32 %s12, 2
      %s28 = sadd.s32 1, %s21
      %p29 = scmp.ge.s32.totalorder %s28, 1
      %s30 = scalar_select %p29, 0, %s28
      %s31 = sadd.s32 1, %s20
      %s32 = scalar_select %p29, %s31, %s20
      %p33 = scmp.ge.s32.totalorder %s32, 1
      %s34 = scalar_select %p33, 0, %s32
      %s35 = sadd.s32 1, %s19
      %s36 = scalar_select %p33, %s35, %s19
      %p37 = scmp.ge.s32.totalorder %s36, 2
      %s38 = scalar_select %p37, 0, %s36
      %s39 = sadd.s32 %s19, %s21
      %s40 = sadd.s32 %s38, %s30
      %s41 = ssub.s32 %s39, %s40
      %p42 = scmp.eq.s32.totalorder %s41, 0
      %s44 = sadd.s32 %s43, 1
      %s45 = scalar_select %p42, %s43, %s44
      %p48 = pneg %p42
      %p49 = scmp.eq.s32.totalorder %s12, 1
      %p50 = por %p48, %p49
      %p51 = scmp.ne.s32.totalorder %s43, %s46
      %p52 = scmp.eq.s32.totalorder %s12, 0
      %p53 = por %p51, %p52
      %p54 = scmp.ne.s32.totalorder %s43, %s46
      %p55 = scmp.eq.s32.totalorder %s17, 1
      %p56 = por %p54, %p55
      %p57 = scmp.ne.s32.totalorder %s46, %s47
      %p58 = scmp.eq.s32.totalorder %s17, 0
      %p59 = por %p57, %p58
      %p60 = scmp.ne.s32.totalorder %s46, %s47
      %p61 = scmp.eq.s32.totalorder %s18, 1
      %p62 = por %p60, %p61
      %p64 = scmp.ne.s32.totalorder %s47, %s63
      %p65 = scmp.eq.s32.totalorder %s18, 0
      %p66 = por %p64, %p65
      %s67 = ssub.s32 %s20, %s34
      %p68 = scmp.eq.s32.totalorder %s67, 0
      %s70 = sadd.s32 %s69, 1
      %s71 = scalar_select %p68, %s69, %s70
      %p74 = pneg %p68
      %p75 = scmp.eq.s32.totalorder %s12, 1
      %p76 = por %p74, %p75
      %p77 = scmp.ne.s32.totalorder %s69, %s72
      %p78 = scmp.eq.s32.totalorder %s12, 0
      %p79 = por %p77, %p78
      %p80 = scmp.ne.s32.totalorder %s69, %s72
      %p81 = scmp.eq.s32.totalorder %s17, 1
      %p82 = por %p80, %p81
      %p83 = scmp.ne.s32.totalorder %s72, %s73
      %p84 = scmp.eq.s32.totalorder %s17, 0
      %p85 = por %p83, %p84
      %p86 = scmp.ne.s32.totalorder %s72, %s73
      %p87 = scmp.eq.s32.totalorder %s18, 1
      %p88 = por %p86, %p87
      %p90 = scmp.ne.s32.totalorder %s73, %s89
      %p91 = scmp.eq.s32.totalorder %s18, 0
      %p92 = por %p90, %p91
      %s93 = ssub.s32 %s20, %s34
      %p94 = scmp.eq.s32.totalorder %s93, 0
      %s96 = sadd.s32 %s95, 1
      %s97 = scalar_select %p94, %s95, %s96
      %p100 = pneg %p94
      %p101 = scmp.eq.s32.totalorder %s12, 1
      %p102 = por %p100, %p101
      %p103 = scmp.ne.s32.totalorder %s95, %s98
      %p104 = scmp.eq.s32.totalorder %s12, 0
      %p105 = por %p103, %p104
      %p106 = scmp.ne.s32.totalorder %s95, %s98
      %p107 = scmp.eq.s32.totalorder %s17, 1
      %p108 = por %p106, %p107
      %p109 = scmp.ne.s32.totalorder %s98, %s99
      %p110 = scmp.eq.s32.totalorder %s17, 0
      %p111 = por %p109, %p110
      %p112 = scmp.ne.s32.totalorder %s98, %s99
      %p113 = scmp.eq.s32.totalorder %s18, 1
      %p114 = por %p112, %p113
      %p116 = scmp.ne.s32.totalorder %s99, %s115
      %p117 = scmp.eq.s32.totalorder %s18, 0
      %p118 = por %p116, %p117
      %s119 = ssub.s32 %s19, %s38
      %s120 = ssub.s32 %s21, %s30
      %s121 = sor.u32 %s119, %s120
      %s122 = ssub.s32 %s20, %s34
      %s123 = sor.u32 %s121, %s122
      %p124 = scmp.eq.s32.totalorder %s123, 0
      %s126 = sadd.s32 %s125, 1
      %s127 = scalar_select %p124, %s125, %s126
      %p130 = pneg %p124
      %p131 = scmp.eq.s32.totalorder %s12, 1
      %p132 = por %p130, %p131
      %p133 = scmp.ne.s32.totalorder %s125, %s128
      %p134 = scmp.eq.s32.totalorder %s12, 0
      %p135 = por %p133, %p134
      %p136 = scmp.ne.s32.totalorder %s125, %s128
      %p137 = scmp.eq.s32.totalorder %s17, 1
      %p138 = por %p136, %p137
      %p139 = scmp.ne.s32.totalorder %s128, %s129
      %p140 = scmp.eq.s32.totalorder %s17, 0
      %p141 = por %p139, %p140
      %p142 = scmp.ne.s32.totalorder %s128, %s129
      %p143 = scmp.eq.s32.totalorder %s18, 1
      %p144 = por %p142, %p143
      %p146 = scmp.ne.s32.totalorder %s129, %s145
      %p147 = scmp.eq.s32.totalorder %s18, 0
      %p148 = por %p146, %p147
      %p149 = scmp.le.s32.totalorder 1, %s12
      %p150 = scmp.lt.s32.totalorder %s12, 3
      %p151 = pnand %p149, %p150
      %p152 = pneg %p151
      // Predicated region
      $region9: #{conv1d_pallas.1} parent=5 // pred_check
        _
      $region10: #{conv1d_pallas.1} parent=5 // pred_check_branch
        %154 = sbr.rel (%p151) target = $region12
      $region11: #{conv1d_pallas.1} parent=5 // pred_region
        %s155 = ssub.s32 %s12, 1
        // Predicated region
        $region13: #{conv1d_pallas.1} parent=11 // pred_check
          %p156 = pneg %p85
        $region14: #{conv1d_pallas.1} parent=11 // pred_check_branch
          %158 = sbr.rel (%p156) target = $region16
        $region15: #{conv1d_pallas.1} parent=11 // pred_region
          %p159 = scmp.lt.s32.totalorder %s23, 0
          %s160 = scalar_select %p159, %s23, 0
          %s161 = smul.addr %s160, 15
          %s162 = smul.addr %s161, 4
          %s163 = scalar_lea.vmem %s1, %s162
        $region16: #{conv1d_pallas.1} parent=11 // pred_fallthru
          _
        // Predicated region
        $region17: #{conv1d_pallas.1} parent=11 // pred_check
          %p164 = pneg %p111
        $region18: #{conv1d_pallas.1} parent=11 // pred_check_branch
          %166 = sbr.rel (%p164) target = $region20
        $region19: #{conv1d_pallas.1} parent=11 // pred_region
          %p167 = scmp.lt.s32.totalorder %s23, 0
          %s168 = scalar_select %p167, %s23, 0
          %s169 = scalar_lea.vmem %s2, %s168
        $region20: #{conv1d_pallas.1} parent=11 // pred_fallthru
          _
      $region12: #{conv1d_pallas.1} parent=5 // pred_fallthru
        _
      %p170 = scmp.lt.s32.totalorder %s12, 2
      // Predicated region
      $region21: #{conv1d_pallas.1} parent=5 // pred_check
        %p171 = pneg %p170
      $region22: #{conv1d_pallas.1} parent=5 // pred_check_branch
        %173 = sbr.rel (%p171) target = $region24
      $region23: #{conv1d_pallas.1} parent=5 // pred_region
        // Predicated region
        $region25: #{conv1d_pallas.1} parent=23 // pred_check
          %p174 = pneg %p53
        $region26: #{conv1d_pallas.1} parent=23 // pred_check_branch
          %176 = sbr.rel (%p174) target = $region28
        $region27: #{conv1d_pallas.1} parent=23 // pred_region
          %s177 = sadd.s32 %s19, %s21
          %p178 = scmp.lt.s32.totalorder %s177, 1
          %s179 = scalar_select %p178, %s177, 1
          %s180 = smul.addr %s179, 10
          %s181 = smul.addr %s180, 4
          %s182 = scalar_lea.vmem %s0, %s181
          %s183 = sadd.s32 %s19, %s21
        $region28: #{conv1d_pallas.1} parent=23 // pred_fallthru
          _
      $region24: #{conv1d_pallas.1} parent=5 // pred_fallthru
        _
      %p184 = scmp.le.s32.totalorder 1, %s12
      %p185 = scmp.lt.s32.totalorder %s12, 3
      %p186 = pnand %p184, %p185
      %p187 = pneg %p186
      // Predicated region
      $region29: #{conv1d_pallas.1} parent=5 // pred_check
        _
      $region30: #{conv1d_pallas.1} parent=5 // pred_check_branch
        %189 = sbr.rel (%p186) target = $region32
      $region31: #{conv1d_pallas.1} parent=5 // pred_region
        %s190 = ssub.s32 %s12, 1
        %s191 = sadd.s32 %s22, %s24
        %p192 = scmp.lt.s32.totalorder %s191, 1
        %s193 = scalar_select %p192, %s191, 1
        %s194 = smul.addr %s193, 10
        %s195 = smul.addr %s194, 4
        %s196 = scalar_lea.vmem %s0, %s195
        %p197 = pneg %p59
        %p198 = pneg %p56
        %p199 = scmp.lt.s32.totalorder %s23, 0
        %s200 = scalar_select %p199, %s23, 0
        %s201 = smul.addr %s200, 15
        %s202 = smul.addr %s201, 4
        %s203 = scalar_lea.vmem %s1, %s202
        %p204 = pneg %p85
        %p205 = pneg %p82
        %p206 = scmp.lt.s32.totalorder %s23, 0
        %s207 = scalar_select %p206, %s23, 0
        %s208 = scalar_lea.vmem %s2, %s207
        %p209 = pneg %p111
        %p210 = pneg %p108
        %p211 = pneg %p141
        %p212 = pneg %p138
        %s213 = sand.u32 %s128, 1
        %s214 = scalar_lea.sflag [#allocation3], %s213
        %s215 = sand.u32 %s128, 1
        %s216 = smul.addr %s215, 32
        %s217 = scalar_lea.vmem [#allocation2], %s216
        %s218 = sadd.s32 %s22, %s24
        %p219 = scmp.lt.s32.totalorder %s218, 1
        %s220 = scalar_select %p219, %s218, 1
        %s221 = smul.addr %s220, 10
        %s222 = smul.addr %s221, 4
        %s223 = scalar_lea.vmem %s0, %s222
        %s224 = sadd.s32 %s22, %s24
        %p225 = scmp.lt.s32.totalorder %s23, 0
        %s226 = scalar_select %p225, %s23, 0
        %s227 = smul.addr %s226, 15
        %s228 = smul.addr %s227, 4
        %s229 = scalar_lea.vmem %s1, %s228
        %p230 = scmp.lt.s32.totalorder %s23, 0
        %s231 = scalar_select %p230, %s23, 0
        %s232 = scalar_lea.vmem %s2, %s231
        %s233 = smul.u32 8, %s24
        %v235 = vld [vmem:[%s223] sm:$0xf]
        %v236 = vld [vmem:[%s223 + $0x4] sm:$0xf]
        %v237 = vld [vmem:[%s223 + $0x8] sm:$0xf]
        %v238 = vld [vmem:[%s223 + $0xc] sm:$0xf]
        %v239 = vld [vmem:[%s223 + $0x10] sm:$0xf]
        %v240 = vld [vmem:[%s223 + $0x14] sm:$0xf]
        %v241 = vld [vmem:[%s223 + $0x18] sm:$0xf]
        %v242 = vld [vmem:[%s223 + $0x1c] sm:$0xf]
        %v243 = vld [vmem:[%s229] sm:$0xf]
        %v244 = vld [vmem:[%s223 + $0x20] sm:$0x1]
        %s245 = scalar_lea.vmem %s229, 4
        %v246 = vld [vmem:[%s245] sm:$0xf]
        %v256 = vunpack.c.l.b16 %v235
        %v257 = vunpack.c.l.b16 %v236
        %v258 = vunpack.c.l.b16 %v237
        %v259 = vunpack.c.l.b16 %v238
        %v260 = vunpack.c.l.b16 %v239
        %v261 = vunpack.c.l.b16 %v240
        %v262 = vunpack.c.l.b16 %v241
        %v263 = vunpack.c.l.b16 %v242
        %v264 = vunpack.c.l.b16 %v244
        %v265 = vpack.c.b16 %v257, %v256
        %v266 = vpack.c.b16 %v259, %v258
        %v267 = vpack.c.b16 %v261, %v260
        %v268 = vpack.c.b16 %v263, %v262
        %v269 = vpack.c.b16 %v264, %v264
        %vm270 = vsmask.f32 7424
        %v272 = vshrl.u32 %v265, 16
        %v274 = vshll.u32 %v265, 16
        %v276 = vrot.slane %v274, 1
        %v277 = vor.u32 %v272, %v276
        %v279 = vshll.u32 %v266, 16
        %v281 = vrot.slane %v279, 1
        %v282 = vsel %vm270, %v277, %v281
        %v283 = vshrl.u32 %v266, 16
        %v285 = vor.u32 %v283, %v281
        %v287 = vshll.u32 %v267, 16
        %v289 = vrot.slane %v287, 1
        %v290 = vsel %vm270, %v285, %v289
        %v291 = vshrl.u32 %v267, 16
        %v293 = vor.u32 %v291, %v289
        %v295 = vshll.u32 %v268, 16
        %v297 = vrot.slane %v295, 1
        %v298 = vsel %vm270, %v293, %v297
        %v299 = vshrl.u32 %v268, 16
        %v301 = vor.u32 %v299, %v297
        %v303 = vshll.u32 %v269, 16
        %v305 = vrot.slane %v303, 1
        %v306 = vsel %vm270, %v301, %v305
        %vm307 = vcmask 64512
        %v309 = vsel %vm307, %v282, 0
        %v312 = vsel %vm307, %v290, 0
        %v315 = vsel %vm307, %v298, 0
        %v318 = vsel %vm307, %v306, 0
        %vm320 = vcmask 1043456
        %v322 = vsel %vm320, %v246, 0
        %324 = vmatprep.subr.bf16.mxu0 0
        %325 = vmatpush1.bf16.msra.mxu0 0
        %326 = vmatprep.subr.bf16.mxu0 0
        %327 = vmatpush1.bf16.msra.mxu0 0
        %328 = vmatprep.subr.bf16.mxu0 0
        %329 = vmatpush1.bf16.msra.mxu0 0
        %330 = vmatprep.subr.bf16.mxu0 0
        %331 = vmatpush1.bf16.msra.mxu0 0
        %332 = vmatprep.subr.bf16.mxu0 0
        %333 = vmatpush1.bf16.msra.mxu0 0
        %334 = vmatprep.subr.bf16.mxu0 0
        %335 = vmatpush1.bf16.msra.mxu0 0
        %336 = vmatprep.subr.bf16.mxu0 0
        %337 = vmatpush1.bf16.msra.mxu0 0
        %338 = vmatprep.subr.bf16.mxu0 0
        %339 = vmatpush1.bf16.msra.mxu0 %v322
        %340 = vmatprep.subr.bf16.mxu0 0
        %341 = vmatpush2.bf16.msra.mxu0 0
        %342 = vmatprep.subr.bf16.mxu0 0
        %343 = vmatpush2.bf16.msra.mxu0 0
        %344 = vmatprep.subr.bf16.mxu0 0
        %345 = vmatpush2.bf16.msra.mxu0 0
        %346 = vmatprep.subr.bf16.mxu0 0
        %347 = vmatpush2.bf16.msra.mxu0 0
        %348 = vmatprep.subr.bf16.mxu0 0
        %349 = vmatpush2.bf16.msra.mxu0 0
        %350 = vmatprep.subr.bf16.mxu0 0
        %351 = vmatpush2.bf16.msra.mxu0 0
        %352 = vmatprep.subr.bf16.mxu0 0
        %353 = vmatpush2.bf16.msra.mxu0 0
        %354 = vmatprep.subr.bf16.mxu0 0
        %355 = vmatpush2.bf16.msra.mxu0 0
        %356 = vmatprep.mubr.bf16.mxu0 0
        %357 = vmatmul.mubr.bf16.gmra.mxu0 %v309
        %v358 = vpop.f32.mrf.mxu0
        %v359 = vadd.f32 0.0, %v358
        %v360 = vpop.f32.mrf.mxu0
        %v361 = vpop.f32.mrf.mxu0
        %v362 = vadd.f32 0.0, %v361
        %v363 = vpop.f32.mrf.mxu0
        %364 = vmatprep.mubr.bf16.mxu0 0
        %365 = vmatmul.mubr.bf16.gmra.mxu0 %v312
        %v366 = vpop.f32.mrf.mxu0
        %v367 = vadd.f32 0.0, %v366
        %v368 = vpop.f32.mrf.mxu0
        %v369 = vpop.f32.mrf.mxu0
        %v370 = vadd.f32 0.0, %v369
        %v371 = vpop.f32.mrf.mxu0
        %372 = vmatprep.mubr.bf16.mxu0 0
        %373 = vmatmul.mubr.bf16.gmra.mxu0 %v315
        %v374 = vpop.f32.mrf.mxu0
        %v375 = vadd.f32 0.0, %v374
        %v376 = vpop.f32.mrf.mxu0
        %v377 = vpop.f32.mrf.mxu0
        %v378 = vadd.f32 0.0, %v377
        %v379 = vpop.f32.mrf.mxu0
        %380 = vmatprep.mubr.bf16.mxu0 0
        %381 = vmatmul.mubr.bf16.gmra.mxu0 %v318
        %v382 = vpop.f32.mrf.mxu0
        %v383 = vadd.f32 0.0, %v382
        %v384 = vpop.f32.mrf.mxu0
        %v385 = vpop.f32.mrf.mxu0
        %v386 = vadd.f32 0.0, %v385
        %v387 = vpop.f32.mrf.mxu0
        %388 = vdwg.mxu0
        %v389 = vsel %vm307, %v265, 0
        %v391 = vsel %vm307, %v266, 0
        %v393 = vsel %vm307, %v267, 0
        %v395 = vsel %vm307, %v268, 0
        %v398 = vsel %vm320, %v243, 0
        %400 = vmatprep.subr.bf16.mxu0 0
        %401 = vmatpush1.bf16.msra.mxu0 0
        %402 = vmatprep.subr.bf16.mxu0 0
        %403 = vmatpush1.bf16.msra.mxu0 0
        %404 = vmatprep.subr.bf16.mxu0 0
        %405 = vmatpush1.bf16.msra.mxu0 0
        %406 = vmatprep.subr.bf16.mxu0 0
        %407 = vmatpush1.bf16.msra.mxu0 0
        %408 = vmatprep.subr.bf16.mxu0 0
        %409 = vmatpush1.bf16.msra.mxu0 0
        %410 = vmatprep.subr.bf16.mxu0 0
        %411 = vmatpush1.bf16.msra.mxu0 0
        %412 = vmatprep.subr.bf16.mxu0 0
        %413 = vmatpush1.bf16.msra.mxu0 0
        %414 = vmatprep.subr.bf16.mxu0 0
        %415 = vmatpush1.bf16.msra.mxu0 %v398
        %416 = vmatprep.subr.bf16.mxu0 0
        %417 = vmatpush2.bf16.msra.mxu0 0
        %418 = vmatprep.subr.bf16.mxu0 0
        %419 = vmatpush2.bf16.msra.mxu0 0
        %420 = vmatprep.subr.bf16.mxu0 0
        %421 = vmatpush2.bf16.msra.mxu0 0
        %422 = vmatprep.subr.bf16.mxu0 0
        %423 = vmatpush2.bf16.msra.mxu0 0
        %424 = vmatprep.subr.bf16.mxu0 0
        %425 = vmatpush2.bf16.msra.mxu0 0
        %426 = vmatprep.subr.bf16.mxu0 0
        %427 = vmatpush2.bf16.msra.mxu0 0
        %428 = vmatprep.subr.bf16.mxu0 0
        %429 = vmatpush2.bf16.msra.mxu0 0
        %430 = vmatprep.subr.bf16.mxu0 0
        %431 = vmatpush2.bf16.msra.mxu0 0
        %432 = vmatprep.mubr.bf16.mxu0 0
        %433 = vmatmul.mubr.bf16.gmra.mxu0 %v389
        %v434 = vpop.f32.mrf.mxu0
        %v435 = vadd.f32 %v359, %v434
        %v436 = vpop.f32.mrf.mxu0
        %v437 = vpop.f32.mrf.mxu0
        %v438 = vadd.f32 %v362, %v437
        %v439 = vpop.f32.mrf.mxu0
        %440 = vmatprep.mubr.bf16.mxu0 0
        %441 = vmatmul.mubr.bf16.gmra.mxu0 %v391
        %v442 = vpop.f32.mrf.mxu0
        %v443 = vadd.f32 %v367, %v442
        %v444 = vpop.f32.mrf.mxu0
        %v445 = vpop.f32.mrf.mxu0
        %v446 = vadd.f32 %v370, %v445
        %v447 = vpop.f32.mrf.mxu0
        %448 = vmatprep.mubr.bf16.mxu0 0
        %449 = vmatmul.mubr.bf16.gmra.mxu0 %v393
        %v450 = vpop.f32.mrf.mxu0
        %v451 = vadd.f32 %v375, %v450
        %v452 = vpop.f32.mrf.mxu0
        %v453 = vpop.f32.mrf.mxu0
        %v454 = vadd.f32 %v378, %v453
        %v455 = vpop.f32.mrf.mxu0
        %456 = vmatprep.mubr.bf16.mxu0 0
        %457 = vmatmul.mubr.bf16.gmra.mxu0 %v395
        %v458 = vpop.f32.mrf.mxu0
        %v459 = vadd.f32 %v383, %v458
        %v460 = vpop.f32.mrf.mxu0
        %v461 = vpop.f32.mrf.mxu0
        %v462 = vadd.f32 %v386, %v461
        %v463 = vpop.f32.mrf.mxu0
        %464 = vdwg.mxu0
        %v465 = vld [vmem:[%s223] sm:$0xe]
        %s466 = scalar_lea.vmem %s229, 8
        %v467 = vld [vmem:[%s466] sm:$0xf]
        %v469 = vunpack.c.l.b16 %v465
        %v470 = vpack.c.b16 %v257, %v469
        %vm471 = vcmask 1046528
        %v472 = vrot.slane %v470, 1
        %v473 = vrot.slane %v266, 1
        %v474 = vsel %vm471, %v472, %v473
        %v475 = vrot.slane %v267, 1
        %v476 = vsel %vm471, %v473, %v475
        %v477 = vrot.slane %v268, 1
        %v478 = vsel %vm471, %v475, %v477
        %v479 = vrot.slane %v269, 1
        %v480 = vsel %vm471, %v477, %v479
        %v482 = vsel %vm307, %v474, 0
        %v485 = vsel %vm307, %v476, 0
        %v488 = vsel %vm307, %v478, 0
        %v491 = vsel %vm307, %v480, 0
        %v494 = vsel %vm320, %v467, 0
        %496 = vmatprep.subr.bf16.mxu0 0
        %497 = vmatpush1.bf16.msra.mxu0 0
        %498 = vmatprep.subr.bf16.mxu0 0
        %499 = vmatpush1.bf16.msra.mxu0 0
        %500 = vmatprep.subr.bf16.mxu0 0
        %501 = vmatpush1.bf16.msra.mxu0 0
        %502 = vmatprep.subr.bf16.mxu0 0
        %503 = vmatpush1.bf16.msra.mxu0 0
        %504 = vmatprep.subr.bf16.mxu0 0
        %505 = vmatpush1.bf16.msra.mxu0 0
        %506 = vmatprep.subr.bf16.mxu0 0
        %507 = vmatpush1.bf16.msra.mxu0 0
        %508 = vmatprep.subr.bf16.mxu0 0
        %509 = vmatpush1.bf16.msra.mxu0 0
        %510 = vmatprep.subr.bf16.mxu0 0
        %511 = vmatpush1.bf16.msra.mxu0 %v494
        %512 = vmatprep.subr.bf16.mxu0 0
        %513 = vmatpush2.bf16.msra.mxu0 0
        %514 = vmatprep.subr.bf16.mxu0 0
        %515 = vmatpush2.bf16.msra.mxu0 0
        %516 = vmatprep.subr.bf16.mxu0 0
        %517 = vmatpush2.bf16.msra.mxu0 0
        %518 = vmatprep.subr.bf16.mxu0 0
        %519 = vmatpush2.bf16.msra.mxu0 0
        %520 = vmatprep.subr.bf16.mxu0 0
        %521 = vmatpush2.bf16.msra.mxu0 0
        %522 = vmatprep.subr.bf16.mxu0 0
        %523 = vmatpush2.bf16.msra.mxu0 0
        %524 = vmatprep.subr.bf16.mxu0 0
        %525 = vmatpush2.bf16.msra.mxu0 0
        %526 = vmatprep.subr.bf16.mxu0 0
        %527 = vmatpush2.bf16.msra.mxu0 0
        %528 = vmatprep.mubr.bf16.mxu0 0
        %529 = vmatmul.mubr.bf16.gmra.mxu0 %v482
        %v530 = vpop.f32.mrf.mxu0
        %v531 = vadd.f32 0.0, %v530
        %v532 = vpop.f32.mrf.mxu0
        %v533 = vpop.f32.mrf.mxu0
        %v534 = vadd.f32 0.0, %v533
        %v535 = vpop.f32.mrf.mxu0
        %536 = vmatprep.mubr.bf16.mxu0 0
        %537 = vmatmul.mubr.bf16.gmra.mxu0 %v485
        %v538 = vpop.f32.mrf.mxu0
        %v539 = vadd.f32 0.0, %v538
        %v540 = vpop.f32.mrf.mxu0
        %v541 = vpop.f32.mrf.mxu0
        %v542 = vadd.f32 0.0, %v541
        %v543 = vpop.f32.mrf.mxu0
        %544 = vmatprep.mubr.bf16.mxu0 0
        %545 = vmatmul.mubr.bf16.gmra.mxu0 %v488
        %v546 = vpop.f32.mrf.mxu0
        %v547 = vadd.f32 0.0, %v546
        %v548 = vpop.f32.mrf.mxu0
        %v549 = vpop.f32.mrf.mxu0
        %v550 = vadd.f32 0.0, %v549
        %v551 = vpop.f32.mrf.mxu0
        %552 = vmatprep.mubr.bf16.mxu0 0
        %553 = vmatmul.mubr.bf16.gmra.mxu0 %v491
        %v554 = vpop.f32.mrf.mxu0
        %v555 = vadd.f32 0.0, %v554
        %v556 = vpop.f32.mrf.mxu0
        %v557 = vpop.f32.mrf.mxu0
        %v558 = vadd.f32 0.0, %v557
        %v559 = vpop.f32.mrf.mxu0
        %560 = vdwg.mxu0
        %v561 = vadd.f32 %v435, %v531
        %v562 = vadd.f32 %v438, %v534
        %v563 = vadd.f32 %v443, %v539
        %v564 = vadd.f32 %v446, %v542
        %v565 = vadd.f32 %v451, %v547
        %v566 = vadd.f32 %v454, %v550
        %v567 = vadd.f32 %v459, %v555
        %v568 = vadd.f32 %v462, %v558
        %v569 = vld [vmem:[%s223 + $0x20] sm:$0x3]
        %s570 = scalar_lea.vmem %s229, 12
        %v571 = vld [vmem:[%s570] sm:$0xf]
        %v573 = vunpack.c.l.b16 %v569
        %v574 = vpack.c.b16 %v573, %v573
        %vm575 = vsmask.f32 6400
        %v577 = vshrl.u32 %v470, 16
        %v579 = vrot.slane %v577, 1
        %v580 = vshll.u32 %v470, 16
        %v582 = vrot.slane %v580, 2
        %v583 = vor.u32 %v579, %v582
        %v584 = vrot.slane %v283, 1
        %v585 = vrot.slane %v279, 2
        %v586 = vor.u32 %v584, %v585
        %v587 = vsel %vm575, %v583, %v586
        %v588 = vrot.slane %v291, 1
        %v589 = vrot.slane %v287, 2
        %v590 = vor.u32 %v588, %v589
        %v591 = vsel %vm575, %v586, %v590
        %v592 = vrot.slane %v299, 1
        %v593 = vrot.slane %v295, 2
        %v594 = vor.u32 %v592, %v593
        %v595 = vsel %vm575, %v590, %v594
        %v597 = vshrl.u32 %v574, 16
        %v599 = vrot.slane %v597, 1
        %v600 = vshll.u32 %v574, 16
        %v602 = vrot.slane %v600, 2
        %v603 = vor.u32 %v599, %v602
        %v604 = vsel %vm575, %v594, %v603
        %v606 = vsel %vm307, %v587, 0
        %v609 = vsel %vm307, %v591, 0
        %v612 = vsel %vm307, %v595, 0
        %v615 = vsel %vm307, %v604, 0
        %v618 = vsel %vm320, %v571, 0
        %620 = vmatprep.subr.bf16.mxu0 0
        %621 = vmatpush1.bf16.msra.mxu0 0
        %622 = vmatprep.subr.bf16.mxu0 0
        %623 = vmatpush1.bf16.msra.mxu0 0
        %624 = vmatprep.subr.bf16.mxu0 0
        %625 = vmatpush1.bf16.msra.mxu0 0
        %626 = vmatprep.subr.bf16.mxu0 0
        %627 = vmatpush1.bf16.msra.mxu0 0
        %628 = vmatprep.subr.bf16.mxu0 0
        %629 = vmatpush1.bf16.msra.mxu0 0
        %630 = vmatprep.subr.bf16.mxu0 0
        %631 = vmatpush1.bf16.msra.mxu0 0
        %632 = vmatprep.subr.bf16.mxu0 0
        %633 = vmatpush1.bf16.msra.mxu0 0
        %634 = vmatprep.subr.bf16.mxu0 0
        %635 = vmatpush1.bf16.msra.mxu0 %v618
        %636 = vmatprep.subr.bf16.mxu0 0
        %637 = vmatpush2.bf16.msra.mxu0 0
        %638 = vmatprep.subr.bf16.mxu0 0
        %639 = vmatpush2.bf16.msra.mxu0 0
        %640 = vmatprep.subr.bf16.mxu0 0
        %641 = vmatpush2.bf16.msra.mxu0 0
        %642 = vmatprep.subr.bf16.mxu0 0
        %643 = vmatpush2.bf16.msra.mxu0 0
        %644 = vmatprep.subr.bf16.mxu0 0
        %645 = vmatpush2.bf16.msra.mxu0 0
        %646 = vmatprep.subr.bf16.mxu0 0
        %647 = vmatpush2.bf16.msra.mxu0 0
        %648 = vmatprep.subr.bf16.mxu0 0
        %649 = vmatpush2.bf16.msra.mxu0 0
        %650 = vmatprep.subr.bf16.mxu0 0
        %651 = vmatpush2.bf16.msra.mxu0 0
        %652 = vmatprep.mubr.bf16.mxu0 0
        %653 = vmatmul.mubr.bf16.gmra.mxu0 %v606
        %v654 = vpop.f32.mrf.mxu0
        %v655 = vadd.f32 0.0, %v654
        %v656 = vpop.f32.mrf.mxu0
        %v657 = vpop.f32.mrf.mxu0
        %v658 = vadd.f32 0.0, %v657
        %v659 = vpop.f32.mrf.mxu0
        %660 = vmatprep.mubr.bf16.mxu0 0
        %661 = vmatmul.mubr.bf16.gmra.mxu0 %v609
        %v662 = vpop.f32.mrf.mxu0
        %v663 = vadd.f32 0.0, %v662
        %v664 = vpop.f32.mrf.mxu0
        %v665 = vpop.f32.mrf.mxu0
        %v666 = vadd.f32 0.0, %v665
        %v667 = vpop.f32.mrf.mxu0
        %668 = vmatprep.mubr.bf16.mxu0 0
        %669 = vmatmul.mubr.bf16.gmra.mxu0 %v612
        %v670 = vpop.f32.mrf.mxu0
        %v671 = vadd.f32 0.0, %v670
        %v672 = vpop.f32.mrf.mxu0
        %v673 = vpop.f32.mrf.mxu0
        %v674 = vadd.f32 0.0, %v673
        %v675 = vpop.f32.mrf.mxu0
        %676 = vmatprep.mubr.bf16.mxu0 0
        %677 = vmatmul.mubr.bf16.gmra.mxu0 %v615
        %v678 = vpop.f32.mrf.mxu0
        %v679 = vadd.f32 0.0, %v678
        %v680 = vpop.f32.mrf.mxu0
        %v681 = vpop.f32.mrf.mxu0
        %v682 = vadd.f32 0.0, %v681
        %v683 = vpop.f32.mrf.mxu0
        %684 = vdwg.mxu0
        %v685 = vadd.f32 %v561, %v655
        %v686 = vadd.f32 %v562, %v658
        %v687 = vadd.f32 %v563, %v663
        %v688 = vadd.f32 %v564, %v666
        %v689 = vadd.f32 %v565, %v671
        %v690 = vadd.f32 %v566, %v674
        %v691 = vadd.f32 %v567, %v679
        %v692 = vadd.f32 %v568, %v682
        %v693 = vld [vmem:[%s223] sm:$0xc]
        %s694 = scalar_lea.vmem %s229, 16
        %v695 = vld [vmem:[%s694] sm:$0xf]
        %v697 = vunpack.c.l.b16 %v693
        %v698 = vpack.c.b16 %v257, %v697
        %vm699 = vcmask 1045504
        %v700 = vrot.slane %v698, 2
        %v701 = vrot.slane %v266, 2
        %v702 = vsel %vm699, %v700, %v701
        %v703 = vrot.slane %v267, 2
        %v704 = vsel %vm699, %v701, %v703
        %v705 = vrot.slane %v268, 2
        %v706 = vsel %vm699, %v703, %v705
        %v707 = vrot.slane %v574, 2
        %v708 = vsel %vm699, %v705, %v707
        %v710 = vsel %vm307, %v702, 0
        %v713 = vsel %vm307, %v704, 0
        %v716 = vsel %vm307, %v706, 0
        %v719 = vsel %vm307, %v708, 0
        %v722 = vsel %vm320, %v695, 0
        %724 = vmatprep.subr.bf16.mxu0 0
        %725 = vmatpush1.bf16.msra.mxu0 0
        %726 = vmatprep.subr.bf16.mxu0 0
        %727 = vmatpush1.bf16.msra.mxu0 0
        %728 = vmatprep.subr.bf16.mxu0 0
        %729 = vmatpush1.bf16.msra.mxu0 0
        %730 = vmatprep.subr.bf16.mxu0 0
        %731 = vmatpush1.bf16.msra.mxu0 0
        %732 = vmatprep.subr.bf16.mxu0 0
        %733 = vmatpush1.bf16.msra.mxu0 0
        %734 = vmatprep.subr.bf16.mxu0 0
        %735 = vmatpush1.bf16.msra.mxu0 0
        %736 = vmatprep.subr.bf16.mxu0 0
        %737 = vmatpush1.bf16.msra.mxu0 0
        %738 = vmatprep.subr.bf16.mxu0 0
        %739 = vmatpush1.bf16.msra.mxu0 %v722
        %740 = vmatprep.subr.bf16.mxu0 0
        %741 = vmatpush2.bf16.msra.mxu0 0
        %742 = vmatprep.subr.bf16.mxu0 0
        %743 = vmatpush2.bf16.msra.mxu0 0
        %744 = vmatprep.subr.bf16.mxu0 0
        %745 = vmatpush2.bf16.msra.mxu0 0
        %746 = vmatprep.subr.bf16.mxu0 0
        %747 = vmatpush2.bf16.msra.mxu0 0
        %748 = vmatprep.subr.bf16.mxu0 0
        %749 = vmatpush2.bf16.msra.mxu0 0
        %750 = vmatprep.subr.bf16.mxu0 0
        %751 = vmatpush2.bf16.msra.mxu0 0
        %752 = vmatprep.subr.bf16.mxu0 0
        %753 = vmatpush2.bf16.msra.mxu0 0
        %754 = vmatprep.subr.bf16.mxu0 0
        %755 = vmatpush2.bf16.msra.mxu0 0
        %756 = vmatprep.mubr.bf16.mxu0 0
        %757 = vmatmul.mubr.bf16.gmra.mxu0 %v710
        %v758 = vpop.f32.mrf.mxu0
        %v759 = vadd.f32 0.0, %v758
        %v760 = vpop.f32.mrf.mxu0
        %v761 = vpop.f32.mrf.mxu0
        %v762 = vadd.f32 0.0, %v761
        %v763 = vpop.f32.mrf.mxu0
        %764 = vmatprep.mubr.bf16.mxu0 0
        %765 = vmatmul.mubr.bf16.gmra.mxu0 %v713
        %v766 = vpop.f32.mrf.mxu0
        %v767 = vadd.f32 0.0, %v766
        %v768 = vpop.f32.mrf.mxu0
        %v769 = vpop.f32.mrf.mxu0
        %v770 = vadd.f32 0.0, %v769
        %v771 = vpop.f32.mrf.mxu0
        %772 = vmatprep.mubr.bf16.mxu0 0
        %773 = vmatmul.mubr.bf16.gmra.mxu0 %v716
        %v774 = vpop.f32.mrf.mxu0
        %v775 = vadd.f32 0.0, %v774
        %v776 = vpop.f32.mrf.mxu0
        %v777 = vpop.f32.mrf.mxu0
        %v778 = vadd.f32 0.0, %v777
        %v779 = vpop.f32.mrf.mxu0
        %780 = vmatprep.mubr.bf16.mxu0 0
        %781 = vmatmul.mubr.bf16.gmra.mxu0 %v719
        %v782 = vpop.f32.mrf.mxu0
        %v783 = vadd.f32 0.0, %v782
        %v784 = vpop.f32.mrf.mxu0
        %v785 = vpop.f32.mrf.mxu0
        %v786 = vadd.f32 0.0, %v785
        %v787 = vpop.f32.mrf.mxu0
        %788 = vdwg.mxu0
        %v789 = vadd.f32 %v685, %v759
        %v790 = vadd.f32 %v686, %v762
        %v791 = vadd.f32 %v687, %v767
        %v792 = vadd.f32 %v688, %v770
        %v793 = vadd.f32 %v689, %v775
        %v794 = vadd.f32 %v690, %v778
        %v795 = vadd.f32 %v691, %v783
        %v796 = vadd.f32 %v692, %v786
        %v797 = vld [vmem:[%s223 + $0x20] sm:$0x7]
        %s798 = scalar_lea.vmem %s229, 20
        %v799 = vld [vmem:[%s798] sm:$0xf]
        %v801 = vunpack.c.l.b16 %v797
        %v802 = vpack.c.b16 %v801, %v801
        %vm803 = vsmask.f32 5376
        %v805 = vshrl.u32 %v698, 16
        %v807 = vrot.slane %v805, 2
        %v808 = vshll.u32 %v698, 16
        %v810 = vrot.slane %v808, 3
        %v811 = vor.u32 %v807, %v810
        %v812 = vrot.slane %v283, 2
        %v813 = vrot.slane %v279, 3
        %v814 = vor.u32 %v812, %v813
        %v815 = vsel %vm803, %v811, %v814
        %v816 = vrot.slane %v291, 2
        %v817 = vrot.slane %v287, 3
        %v818 = vor.u32 %v816, %v817
        %v819 = vsel %vm803, %v814, %v818
        %v820 = vrot.slane %v299, 2
        %v821 = vrot.slane %v295, 3
        %v822 = vor.u32 %v820, %v821
        %v823 = vsel %vm803, %v818, %v822
        %v825 = vshrl.u32 %v802, 16
        %v827 = vrot.slane %v825, 2
        %v828 = vshll.u32 %v802, 16
        %v830 = vrot.slane %v828, 3
        %v831 = vor.u32 %v827, %v830
        %v832 = vsel %vm803, %v822, %v831
        %v834 = vsel %vm307, %v815, 0
        %v837 = vsel %vm307, %v819, 0
        %v840 = vsel %vm307, %v823, 0
        %v843 = vsel %vm307, %v832, 0
        %v846 = vsel %vm320, %v799, 0
        %848 = vmatprep.subr.bf16.mxu0 0
        %849 = vmatpush1.bf16.msra.mxu0 0
        %850 = vmatprep.subr.bf16.mxu0 0
        %851 = vmatpush1.bf16.msra.mxu0 0
        %852 = vmatprep.subr.bf16.mxu0 0
        %853 = vmatpush1.bf16.msra.mxu0 0
        %854 = vmatprep.subr.bf16.mxu0 0
        %855 = vmatpush1.bf16.msra.mxu0 0
        %856 = vmatprep.subr.bf16.mxu0 0
        %857 = vmatpush1.bf16.msra.mxu0 0
        %858 = vmatprep.subr.bf16.mxu0 0
        %859 = vmatpush1.bf16.msra.mxu0 0
        %860 = vmatprep.subr.bf16.mxu0 0
        %861 = vmatpush1.bf16.msra.mxu0 0
        %862 = vmatprep.subr.bf16.mxu0 0
        %863 = vmatpush1.bf16.msra.mxu0 %v846
        %864 = vmatprep.subr.bf16.mxu0 0
        %865 = vmatpush2.bf16.msra.mxu0 0
        %866 = vmatprep.subr.bf16.mxu0 0
        %867 = vmatpush2.bf16.msra.mxu0 0
        %868 = vmatprep.subr.bf16.mxu0 0
        %869 = vmatpush2.bf16.msra.mxu0 0
        %870 = vmatprep.subr.bf16.mxu0 0
        %871 = vmatpush2.bf16.msra.mxu0 0
        %872 = vmatprep.subr.bf16.mxu0 0
        %873 = vmatpush2.bf16.msra.mxu0 0
        %874 = vmatprep.subr.bf16.mxu0 0
        %875 = vmatpush2.bf16.msra.mxu0 0
        %876 = vmatprep.subr.bf16.mxu0 0
        %877 = vmatpush2.bf16.msra.mxu0 0
        %878 = vmatprep.subr.bf16.mxu0 0
        %879 = vmatpush2.bf16.msra.mxu0 0
        %880 = vmatprep.mubr.bf16.mxu0 0
        %881 = vmatmul.mubr.bf16.gmra.mxu0 %v834
        %v882 = vpop.f32.mrf.mxu0
        %v883 = vadd.f32 0.0, %v882
        %v884 = vpop.f32.mrf.mxu0
        %v885 = vpop.f32.mrf.mxu0
        %v886 = vadd.f32 0.0, %v885
        %v887 = vpop.f32.mrf.mxu0
        %888 = vmatprep.mubr.bf16.mxu0 0
        %889 = vmatmul.mubr.bf16.gmra.mxu0 %v837
        %v890 = vpop.f32.mrf.mxu0
        %v891 = vadd.f32 0.0, %v890
        %v892 = vpop.f32.mrf.mxu0
        %v893 = vpop.f32.mrf.mxu0
        %v894 = vadd.f32 0.0, %v893
        %v895 = vpop.f32.mrf.mxu0
        %896 = vmatprep.mubr.bf16.mxu0 0
        %897 = vmatmul.mubr.bf16.gmra.mxu0 %v840
        %v898 = vpop.f32.mrf.mxu0
        %v899 = vadd.f32 0.0, %v898
        %v900 = vpop.f32.mrf.mxu0
        %v901 = vpop.f32.mrf.mxu0
        %v902 = vadd.f32 0.0, %v901
        %v903 = vpop.f32.mrf.mxu0
        %904 = vmatprep.mubr.bf16.mxu0 0
        %905 = vmatmul.mubr.bf16.gmra.mxu0 %v843
        %v906 = vpop.f32.mrf.mxu0
        %v907 = vadd.f32 0.0, %v906
        %v908 = vpop.f32.mrf.mxu0
        %v909 = vpop.f32.mrf.mxu0
        %v910 = vadd.f32 0.0, %v909
        %v911 = vpop.f32.mrf.mxu0
        %912 = vdwg.mxu0
        %v913 = vadd.f32 %v789, %v883
        %v914 = vadd.f32 %v790, %v886
        %v915 = vadd.f32 %v791, %v891
        %v916 = vadd.f32 %v792, %v894
        %v917 = vadd.f32 %v793, %v899
        %v918 = vadd.f32 %v794, %v902
        %v919 = vadd.f32 %v795, %v907
        %v920 = vadd.f32 %v796, %v910
        %v921 = vld [vmem:[%s223] sm:$0x8]
        %s922 = scalar_lea.vmem %s229, 24
        %v923 = vld [vmem:[%s922] sm:$0xf]
        %v925 = vunpack.c.l.b16 %v921
        %v926 = vpack.c.b16 %v257, %v925
        %vm927 = vcmask 1044480
        %v928 = vrot.slane %v926, 3
        %v929 = vrot.slane %v266, 3
        %v930 = vsel %vm927, %v928, %v929
        %v931 = vrot.slane %v267, 3
        %v932 = vsel %vm927, %v929, %v931
        %v933 = vrot.slane %v268, 3
        %v934 = vsel %vm927, %v931, %v933
        %v935 = vrot.slane %v802, 3
        %v936 = vsel %vm927, %v933, %v935
        %v938 = vsel %vm307, %v930, 0
        %v941 = vsel %vm307, %v932, 0
        %v944 = vsel %vm307, %v934, 0
        %v947 = vsel %vm307, %v936, 0
        %v950 = vsel %vm320, %v923, 0
        %952 = vmatprep.subr.bf16.mxu0 0
        %953 = vmatpush1.bf16.msra.mxu0 0
        %954 = vmatprep.subr.bf16.mxu0 0
        %955 = vmatpush1.bf16.msra.mxu0 0
        %956 = vmatprep.subr.bf16.mxu0 0
        %957 = vmatpush1.bf16.msra.mxu0 0
        %958 = vmatprep.subr.bf16.mxu0 0
        %959 = vmatpush1.bf16.msra.mxu0 0
        %960 = vmatprep.subr.bf16.mxu0 0
        %961 = vmatpush1.bf16.msra.mxu0 0
        %962 = vmatprep.subr.bf16.mxu0 0
        %963 = vmatpush1.bf16.msra.mxu0 0
        %964 = vmatprep.subr.bf16.mxu0 0
        %965 = vmatpush1.bf16.msra.mxu0 0
        %966 = vmatprep.subr.bf16.mxu0 0
        %967 = vmatpush1.bf16.msra.mxu0 %v950
        %968 = vmatprep.subr.bf16.mxu0 0
        %969 = vmatpush2.bf16.msra.mxu0 0
        %970 = vmatprep.subr.bf16.mxu0 0
        %971 = vmatpush2.bf16.msra.mxu0 0
        %972 = vmatprep.subr.bf16.mxu0 0
        %973 = vmatpush2.bf16.msra.mxu0 0
        %974 = vmatprep.subr.bf16.mxu0 0
        %975 = vmatpush2.bf16.msra.mxu0 0
        %976 = vmatprep.subr.bf16.mxu0 0
        %977 = vmatpush2.bf16.msra.mxu0 0
        %978 = vmatprep.subr.bf16.mxu0 0
        %979 = vmatpush2.bf16.msra.mxu0 0
        %980 = vmatprep.subr.bf16.mxu0 0
        %981 = vmatpush2.bf16.msra.mxu0 0
        %982 = vmatprep.subr.bf16.mxu0 0
        %983 = vmatpush2.bf16.msra.mxu0 0
        %984 = vmatprep.mubr.bf16.mxu0 0
        %985 = vmatmul.mubr.bf16.gmra.mxu0 %v938
        %v986 = vpop.f32.mrf.mxu0
        %v987 = vadd.f32 0.0, %v986
        %v988 = vpop.f32.mrf.mxu0
        %v989 = vpop.f32.mrf.mxu0
        %v990 = vadd.f32 0.0, %v989
        %v991 = vpop.f32.mrf.mxu0
        %992 = vmatprep.mubr.bf16.mxu0 0
        %993 = vmatmul.mubr.bf16.gmra.mxu0 %v941
        %v994 = vpop.f32.mrf.mxu0
        %v995 = vadd.f32 0.0, %v994
        %v996 = vpop.f32.mrf.mxu0
        %v997 = vpop.f32.mrf.mxu0
        %v998 = vadd.f32 0.0, %v997
        %v999 = vpop.f32.mrf.mxu0
        %1000 = vmatprep.mubr.bf16.mxu0 0
        %1001 = vmatmul.mubr.bf16.gmra.mxu0 %v944
        %v1002 = vpop.f32.mrf.mxu0
        %v1003 = vadd.f32 0.0, %v1002
        %v1004 = vpop.f32.mrf.mxu0
        %v1005 = vpop.f32.mrf.mxu0
        %v1006 = vadd.f32 0.0, %v1005
        %v1007 = vpop.f32.mrf.mxu0
        %1008 = vmatprep.mubr.bf16.mxu0 0
        %1009 = vmatmul.mubr.bf16.gmra.mxu0 %v947
        %v1010 = vpop.f32.mrf.mxu0
        %v1011 = vadd.f32 0.0, %v1010
        %v1012 = vpop.f32.mrf.mxu0
        %v1013 = vpop.f32.mrf.mxu0
        %v1014 = vadd.f32 0.0, %v1013
        %v1015 = vpop.f32.mrf.mxu0
        %1016 = vdwg.mxu0
        %v1017 = vadd.f32 %v913, %v987
        %v1018 = vadd.f32 %v914, %v990
        %v1019 = vadd.f32 %v915, %v995
        %v1020 = vadd.f32 %v916, %v998
        %v1021 = vadd.f32 %v917, %v1003
        %v1022 = vadd.f32 %v918, %v1006
        %v1023 = vadd.f32 %v919, %v1011
        %v1024 = vadd.f32 %v920, %v1014
        %v1025 = vld [vmem:[%s223 + $0x20] sm:$0xf]
        %s1026 = scalar_lea.vmem %s229, 28
        %v1027 = vld [vmem:[%s1026] sm:$0xf]
        %v1029 = vunpack.c.l.b16 %v1025
        %v1030 = vpack.c.b16 %v1029, %v1029
        %vm1031 = vsmask.f32 4352
        %v1033 = vshrl.u32 %v926, 16
        %v1035 = vrot.slane %v1033, 3
        %v1036 = vshll.u32 %v926, 16
        %v1038 = vrot.slane %v1036, 4
        %v1039 = vor.u32 %v1035, %v1038
        %v1040 = vrot.slane %v283, 3
        %v1041 = vrot.slane %v279, 4
        %v1042 = vor.u32 %v1040, %v1041
        %v1043 = vsel %vm1031, %v1039, %v1042
        %v1044 = vrot.slane %v291, 3
        %v1045 = vrot.slane %v287, 4
        %v1046 = vor.u32 %v1044, %v1045
        %v1047 = vsel %vm1031, %v1042, %v1046
        %v1048 = vrot.slane %v299, 3
        %v1049 = vrot.slane %v295, 4
        %v1050 = vor.u32 %v1048, %v1049
        %v1051 = vsel %vm1031, %v1046, %v1050
        %v1053 = vshrl.u32 %v1030, 16
        %v1055 = vrot.slane %v1053, 3
        %v1056 = vshll.u32 %v1030, 16
        %v1058 = vrot.slane %v1056, 4
        %v1059 = vor.u32 %v1055, %v1058
        %v1060 = vsel %vm1031, %v1050, %v1059
        %v1062 = vsel %vm307, %v1043, 0
        %v1065 = vsel %vm307, %v1047, 0
        %v1068 = vsel %vm307, %v1051, 0
        %v1071 = vsel %vm307, %v1060, 0
        %v1074 = vsel %vm320, %v1027, 0
        %1076 = vmatprep.subr.bf16.mxu0 0
        %1077 = vmatpush1.bf16.msra.mxu0 0
        %1078 = vmatprep.subr.bf16.mxu0 0
        %1079 = vmatpush1.bf16.msra.mxu0 0
        %1080 = vmatprep.subr.bf16.mxu0 0
        %1081 = vmatpush1.bf16.msra.mxu0 0
        %1082 = vmatprep.subr.bf16.mxu0 0
        %1083 = vmatpush1.bf16.msra.mxu0 0
        %1084 = vmatprep.subr.bf16.mxu0 0
        %1085 = vmatpush1.bf16.msra.mxu0 0
        %1086 = vmatprep.subr.bf16.mxu0 0
        %1087 = vmatpush1.bf16.msra.mxu0 0
        %1088 = vmatprep.subr.bf16.mxu0 0
        %1089 = vmatpush1.bf16.msra.mxu0 0
        %1090 = vmatprep.subr.bf16.mxu0 0
        %1091 = vmatpush1.bf16.msra.mxu0 %v1074
        %1092 = vmatprep.subr.bf16.mxu0 0
        %1093 = vmatpush2.bf16.msra.mxu0 0
        %1094 = vmatprep.subr.bf16.mxu0 0
        %1095 = vmatpush2.bf16.msra.mxu0 0
        %1096 = vmatprep.subr.bf16.mxu0 0
        %1097 = vmatpush2.bf16.msra.mxu0 0
        %1098 = vmatprep.subr.bf16.mxu0 0
        %1099 = vmatpush2.bf16.msra.mxu0 0
        %1100 = vmatprep.subr.bf16.mxu0 0
        %1101 = vmatpush2.bf16.msra.mxu0 0
        %1102 = vmatprep.subr.bf16.mxu0 0
        %1103 = vmatpush2.bf16.msra.mxu0 0
        %1104 = vmatprep.subr.bf16.mxu0 0
        %1105 = vmatpush2.bf16.msra.mxu0 0
        %1106 = vmatprep.subr.bf16.mxu0 0
        %1107 = vmatpush2.bf16.msra.mxu0 0
        %1108 = vmatprep.mubr.bf16.mxu0 0
        %1109 = vmatmul.mubr.bf16.gmra.mxu0 %v1062
        %v1110 = vpop.f32.mrf.mxu0
        %v1111 = vadd.f32 0.0, %v1110
        %v1112 = vpop.f32.mrf.mxu0
        %v1113 = vpop.f32.mrf.mxu0
        %v1114 = vadd.f32 0.0, %v1113
        %v1115 = vpop.f32.mrf.mxu0
        %1116 = vmatprep.mubr.bf16.mxu0 0
        %1117 = vmatmul.mubr.bf16.gmra.mxu0 %v1065
        %v1118 = vpop.f32.mrf.mxu0
        %v1119 = vadd.f32 0.0, %v1118
        %v1120 = vpop.f32.mrf.mxu0
        %v1121 = vpop.f32.mrf.mxu0
        %v1122 = vadd.f32 0.0, %v1121
        %v1123 = vpop.f32.mrf.mxu0
        %1124 = vmatprep.mubr.bf16.mxu0 0
        %1125 = vmatmul.mubr.bf16.gmra.mxu0 %v1068
        %v1126 = vpop.f32.mrf.mxu0
        %v1127 = vadd.f32 0.0, %v1126
        %v1128 = vpop.f32.mrf.mxu0
        %v1129 = vpop.f32.mrf.mxu0
        %v1130 = vadd.f32 0.0, %v1129
        %v1131 = vpop.f32.mrf.mxu0
        %1132 = vmatprep.mubr.bf16.mxu0 0
        %1133 = vmatmul.mubr.bf16.gmra.mxu0 %v1071
        %v1134 = vpop.f32.mrf.mxu0
        %v1135 = vadd.f32 0.0, %v1134
        %v1136 = vpop.f32.mrf.mxu0
        %v1137 = vpop.f32.mrf.mxu0
        %v1138 = vadd.f32 0.0, %v1137
        %v1139 = vpop.f32.mrf.mxu0
        %1140 = vdwg.mxu0
        %v1141 = vadd.f32 %v1017, %v1111
        %v1142 = vadd.f32 %v1018, %v1114
        %v1143 = vadd.f32 %v1019, %v1119
        %v1144 = vadd.f32 %v1020, %v1122
        %v1145 = vadd.f32 %v1021, %v1127
        %v1146 = vadd.f32 %v1022, %v1130
        %v1147 = vadd.f32 %v1023, %v1135
        %v1148 = vadd.f32 %v1024, %v1138
        %s1149 = scalar_lea.vmem %s229, 32
        %v1150 = vld [vmem:[%s1149] sm:$0xf]
        %v1151 = vpack.c.b16 %v258, %v257
        %v1152 = vpack.c.b16 %v260, %v259
        %v1153 = vpack.c.b16 %v262, %v261
        %v1154 = vpack.c.b16 %v1029, %v263
        %v1156 = vsel %vm307, %v1151, 0
        %v1159 = vsel %vm307, %v1152, 0
        %v1162 = vsel %vm307, %v1153, 0
        %v1165 = vsel %vm307, %v1154, 0
        %v1168 = vsel %vm320, %v1150, 0
        %1170 = vmatprep.subr.bf16.mxu0 0
        %1171 = vmatpush1.bf16.msra.mxu0 0
        %1172 = vmatprep.subr.bf16.mxu0 0
        %1173 = vmatpush1.bf16.msra.mxu0 0
        %1174 = vmatprep.subr.bf16.mxu0 0
        %1175 = vmatpush1.bf16.msra.mxu0 0
        %1176 = vmatprep.subr.bf16.mxu0 0
        %1177 = vmatpush1.bf16.msra.mxu0 0
        %1178 = vmatprep.subr.bf16.mxu0 0
        %1179 = vmatpush1.bf16.msra.mxu0 0
        %1180 = vmatprep.subr.bf16.mxu0 0
        %1181 = vmatpush1.bf16.msra.mxu0 0
        %1182 = vmatprep.subr.bf16.mxu0 0
        %1183 = vmatpush1.bf16.msra.mxu0 0
        %1184 = vmatprep.subr.bf16.mxu0 0
        %1185 = vmatpush1.bf16.msra.mxu0 %v1168
        %1186 = vmatprep.subr.bf16.mxu0 0
        %1187 = vmatpush2.bf16.msra.mxu0 0
        %1188 = vmatprep.subr.bf16.mxu0 0
        %1189 = vmatpush2.bf16.msra.mxu0 0
        %1190 = vmatprep.subr.bf16.mxu0 0
        %1191 = vmatpush2.bf16.msra.mxu0 0
        %1192 = vmatprep.subr.bf16.mxu0 0
        %1193 = vmatpush2.bf16.msra.mxu0 0
        %1194 = vmatprep.subr.bf16.mxu0 0
        %1195 = vmatpush2.bf16.msra.mxu0 0
        %1196 = vmatprep.subr.bf16.mxu0 0
        %1197 = vmatpush2.bf16.msra.mxu0 0
        %1198 = vmatprep.subr.bf16.mxu0 0
        %1199 = vmatpush2.bf16.msra.mxu0 0
        %1200 = vmatprep.subr.bf16.mxu0 0
        %1201 = vmatpush2.bf16.msra.mxu0 0
        %1202 = vmatprep.mubr.bf16.mxu0 0
        %1203 = vmatmul.mubr.bf16.gmra.mxu0 %v1156
        %v1204 = vpop.f32.mrf.mxu0
        %v1205 = vadd.f32 0.0, %v1204
        %v1206 = vpop.f32.mrf.mxu0
        %v1207 = vpop.f32.mrf.mxu0
        %v1208 = vadd.f32 0.0, %v1207
        %v1209 = vpop.f32.mrf.mxu0
        %1210 = vmatprep.mubr.bf16.mxu0 0
        %1211 = vmatmul.mubr.bf16.gmra.mxu0 %v1159
        %v1212 = vpop.f32.mrf.mxu0
        %v1213 = vadd.f32 0.0, %v1212
        %v1214 = vpop.f32.mrf.mxu0
        %v1215 = vpop.f32.mrf.mxu0
        %v1216 = vadd.f32 0.0, %v1215
        %v1217 = vpop.f32.mrf.mxu0
        %1218 = vmatprep.mubr.bf16.mxu0 0
        %1219 = vmatmul.mubr.bf16.gmra.mxu0 %v1162
        %v1220 = vpop.f32.mrf.mxu0
        %v1221 = vadd.f32 0.0, %v1220
        %v1222 = vpop.f32.mrf.mxu0
        %v1223 = vpop.f32.mrf.mxu0
        %v1224 = vadd.f32 0.0, %v1223
        %v1225 = vpop.f32.mrf.mxu0
        %1226 = vmatprep.mubr.bf16.mxu0 0
        %1227 = vmatmul.mubr.bf16.gmra.mxu0 %v1165
        %v1228 = vpop.f32.mrf.mxu0
        %v1229 = vadd.f32 0.0, %v1228
        %v1230 = vpop.f32.mrf.mxu0
        %v1231 = vpop.f32.mrf.mxu0
        %v1232 = vadd.f32 0.0, %v1231
        %v1233 = vpop.f32.mrf.mxu0
        %1234 = vdwg.mxu0
        %v1235 = vadd.f32 %v1141, %v1205
        %v1236 = vadd.f32 %v1142, %v1208
        %v1237 = vadd.f32 %v1143, %v1213
        %v1238 = vadd.f32 %v1144, %v1216
        %v1239 = vadd.f32 %v1145, %v1221
        %v1240 = vadd.f32 %v1146, %v1224
        %v1241 = vadd.f32 %v1147, %v1229
        %v1242 = vadd.f32 %v1148, %v1232
        %v1243 = vld [vmem:[%s223 + $0x4] sm:$0xf]
        %v1244 = vld [vmem:[%s223 + $0x8] sm:$0xf]
        %v1245 = vld [vmem:[%s223 + $0xc] sm:$0xf]
        %v1246 = vld [vmem:[%s223 + $0x10] sm:$0xf]
        %v1247 = vld [vmem:[%s223 + $0x14] sm:$0xf]
        %v1248 = vld [vmem:[%s223 + $0x18] sm:$0xf]
        %v1249 = vld [vmem:[%s223 + $0x1c] sm:$0xf]
        %v1250 = vld [vmem:[%s223 + $0x20] sm:$0xf]
        %v1251 = vld [vmem:[%s223 + $0x24] sm:$0x1]
        %s1252 = scalar_lea.vmem %s229, 36
        %v1253 = vld [vmem:[%s1252] sm:$0xf]
        %v1263 = vunpack.c.l.b16 %v1243
        %v1264 = vunpack.c.l.b16 %v1244
        %v1265 = vunpack.c.l.b16 %v1245
        %v1266 = vunpack.c.l.b16 %v1246
        %v1267 = vunpack.c.l.b16 %v1247
        %v1268 = vunpack.c.l.b16 %v1248
        %v1269 = vunpack.c.l.b16 %v1249
        %v1270 = vunpack.c.l.b16 %v1250
        %v1271 = vunpack.c.l.b16 %v1251
        %v1272 = vpack.c.b16 %v1264, %v1263
        %v1273 = vpack.c.b16 %v1266, %v1265
        %v1274 = vpack.c.b16 %v1268, %v1267
        %v1275 = vpack.c.b16 %v1270, %v1269
        %v1276 = vpack.c.b16 %v1271, %v1271
        %v1278 = vshrl.u32 %v1272, 16
        %v1280 = vshll.u32 %v1272, 16
        %v1282 = vrot.slane %v1280, 1
        %v1283 = vor.u32 %v1278, %v1282
        %v1285 = vshll.u32 %v1273, 16
        %v1287 = vrot.slane %v1285, 1
        %v1288 = vsel %vm270, %v1283, %v1287
        %v1289 = vshrl.u32 %v1273, 16
        %v1291 = vor.u32 %v1289, %v1287
        %v1293 = vshll.u32 %v1274, 16
        %v1295 = vrot.slane %v1293, 1
        %v1296 = vsel %vm270, %v1291, %v1295
        %v1297 = vshrl.u32 %v1274, 16
        %v1299 = vor.u32 %v1297, %v1295
        %v1301 = vshll.u32 %v1275, 16
        %v1303 = vrot.slane %v1301, 1
        %v1304 = vsel %vm270, %v1299, %v1303
        %v1305 = vshrl.u32 %v1275, 16
        %v1307 = vor.u32 %v1305, %v1303
        %v1309 = vshll.u32 %v1276, 16
        %v1311 = vrot.slane %v1309, 1
        %v1312 = vsel %vm270, %v1307, %v1311
        %v1314 = vsel %vm307, %v1288, 0
        %v1317 = vsel %vm307, %v1296, 0
        %v1320 = vsel %vm307, %v1304, 0
        %v1323 = vsel %vm307, %v1312, 0
        %v1326 = vsel %vm320, %v1253, 0
        %1328 = vmatprep.subr.bf16.mxu0 0
        %1329 = vmatpush1.bf16.msra.mxu0 0
        %1330 = vmatprep.subr.bf16.mxu0 0
        %1331 = vmatpush1.bf16.msra.mxu0 0
        %1332 = vmatprep.subr.bf16.mxu0 0
        %1333 = vmatpush1.bf16.msra.mxu0 0
        %1334 = vmatprep.subr.bf16.mxu0 0
        %1335 = vmatpush1.bf16.msra.mxu0 0
        %1336 = vmatprep.subr.bf16.mxu0 0
        %1337 = vmatpush1.bf16.msra.mxu0 0
        %1338 = vmatprep.subr.bf16.mxu0 0
        %1339 = vmatpush1.bf16.msra.mxu0 0
        %1340 = vmatprep.subr.bf16.mxu0 0
        %1341 = vmatpush1.bf16.msra.mxu0 0
        %1342 = vmatprep.subr.bf16.mxu0 0
        %1343 = vmatpush1.bf16.msra.mxu0 %v1326
        %1344 = vmatprep.subr.bf16.mxu0 0
        %1345 = vmatpush2.bf16.msra.mxu0 0
        %1346 = vmatprep.subr.bf16.mxu0 0
        %1347 = vmatpush2.bf16.msra.mxu0 0
        %1348 = vmatprep.subr.bf16.mxu0 0
        %1349 = vmatpush2.bf16.msra.mxu0 0
        %1350 = vmatprep.subr.bf16.mxu0 0
        %1351 = vmatpush2.bf16.msra.mxu0 0
        %1352 = vmatprep.subr.bf16.mxu0 0
        %1353 = vmatpush2.bf16.msra.mxu0 0
        %1354 = vmatprep.subr.bf16.mxu0 0
        %1355 = vmatpush2.bf16.msra.mxu0 0
        %1356 = vmatprep.subr.bf16.mxu0 0
        %1357 = vmatpush2.bf16.msra.mxu0 0
        %1358 = vmatprep.subr.bf16.mxu0 0
        %1359 = vmatpush2.bf16.msra.mxu0 0
        %1360 = vmatprep.mubr.bf16.mxu0 0
        %1361 = vmatmul.mubr.bf16.gmra.mxu0 %v1314
        %v1362 = vpop.f32.mrf.mxu0
        %v1363 = vadd.f32 0.0, %v1362
        %v1364 = vpop.f32.mrf.mxu0
        %v1365 = vpop.f32.mrf.mxu0
        %v1366 = vadd.f32 0.0, %v1365
        %v1367 = vpop.f32.mrf.mxu0
        %1368 = vmatprep.mubr.bf16.mxu0 0
        %1369 = vmatmul.mubr.bf16.gmra.mxu0 %v1317
        %v1370 = vpop.f32.mrf.mxu0
        %v1371 = vadd.f32 0.0, %v1370
        %v1372 = vpop.f32.mrf.mxu0
        %v1373 = vpop.f32.mrf.mxu0
        %v1374 = vadd.f32 0.0, %v1373
        %v1375 = vpop.f32.mrf.mxu0
        %1376 = vmatprep.mubr.bf16.mxu0 0
        %1377 = vmatmul.mubr.bf16.gmra.mxu0 %v1320
        %v1378 = vpop.f32.mrf.mxu0
        %v1379 = vadd.f32 0.0, %v1378
        %v1380 = vpop.f32.mrf.mxu0
        %v1381 = vpop.f32.mrf.mxu0
        %v1382 = vadd.f32 0.0, %v1381
        %v1383 = vpop.f32.mrf.mxu0
        %1384 = vmatprep.mubr.bf16.mxu0 0
        %1385 = vmatmul.mubr.bf16.gmra.mxu0 %v1323
        %v1386 = vpop.f32.mrf.mxu0
        %v1387 = vadd.f32 0.0, %v1386
        %v1388 = vpop.f32.mrf.mxu0
        %v1389 = vpop.f32.mrf.mxu0
        %v1390 = vadd.f32 0.0, %v1389
        %v1391 = vpop.f32.mrf.mxu0
        %1392 = vdwg.mxu0
        %v1393 = vadd.f32 %v1235, %v1363
        %v1394 = vadd.f32 %v1236, %v1366
        %v1395 = vadd.f32 %v1237, %v1371
        %v1396 = vadd.f32 %v1238, %v1374
        %v1397 = vadd.f32 %v1239, %v1379
        %v1398 = vadd.f32 %v1240, %v1382
        %v1399 = vadd.f32 %v1241, %v1387
        %v1400 = vadd.f32 %v1242, %v1390
        %v1401 = vld [vmem:[%s223 + $0x4] sm:$0xe]
        %s1402 = scalar_lea.vmem %s229, 40
        %v1403 = vld [vmem:[%s1402] sm:$0xf]
        %v1405 = vunpack.c.l.b16 %v1401
        %v1406 = vpack.c.b16 %v1264, %v1405
        %v1407 = vrot.slane %v1406, 1
        %v1408 = vrot.slane %v1273, 1
        %v1409 = vsel %vm471, %v1407, %v1408
        %v1410 = vrot.slane %v1274, 1
        %v1411 = vsel %vm471, %v1408, %v1410
        %v1412 = vrot.slane %v1275, 1
        %v1413 = vsel %vm471, %v1410, %v1412
        %v1414 = vrot.slane %v1276, 1
        %v1415 = vsel %vm471, %v1412, %v1414
        %v1417 = vsel %vm307, %v1409, 0
        %v1420 = vsel %vm307, %v1411, 0
        %v1423 = vsel %vm307, %v1413, 0
        %v1426 = vsel %vm307, %v1415, 0
        %v1429 = vsel %vm320, %v1403, 0
        %1431 = vmatprep.subr.bf16.mxu0 0
        %1432 = vmatpush1.bf16.msra.mxu0 0
        %1433 = vmatprep.subr.bf16.mxu0 0
        %1434 = vmatpush1.bf16.msra.mxu0 0
        %1435 = vmatprep.subr.bf16.mxu0 0
        %1436 = vmatpush1.bf16.msra.mxu0 0
        %1437 = vmatprep.subr.bf16.mxu0 0
        %1438 = vmatpush1.bf16.msra.mxu0 0
        %1439 = vmatprep.subr.bf16.mxu0 0
        %1440 = vmatpush1.bf16.msra.mxu0 0
        %1441 = vmatprep.subr.bf16.mxu0 0
        %1442 = vmatpush1.bf16.msra.mxu0 0
        %1443 = vmatprep.subr.bf16.mxu0 0
        %1444 = vmatpush1.bf16.msra.mxu0 0
        %1445 = vmatprep.subr.bf16.mxu0 0
        %1446 = vmatpush1.bf16.msra.mxu0 %v1429
        %1447 = vmatprep.subr.bf16.mxu0 0
        %1448 = vmatpush2.bf16.msra.mxu0 0
        %1449 = vmatprep.subr.bf16.mxu0 0
        %1450 = vmatpush2.bf16.msra.mxu0 0
        %1451 = vmatprep.subr.bf16.mxu0 0
        %1452 = vmatpush2.bf16.msra.mxu0 0
        %1453 = vmatprep.subr.bf16.mxu0 0
        %1454 = vmatpush2.bf16.msra.mxu0 0
        %1455 = vmatprep.subr.bf16.mxu0 0
        %1456 = vmatpush2.bf16.msra.mxu0 0
        %1457 = vmatprep.subr.bf16.mxu0 0
        %1458 = vmatpush2.bf16.msra.mxu0 0
        %1459 = vmatprep.subr.bf16.mxu0 0
        %1460 = vmatpush2.bf16.msra.mxu0 0
        %1461 = vmatprep.subr.bf16.mxu0 0
        %1462 = vmatpush2.bf16.msra.mxu0 0
        %1463 = vmatprep.mubr.bf16.mxu0 0
        %1464 = vmatmul.mubr.bf16.gmra.mxu0 %v1417
        %v1465 = vpop.f32.mrf.mxu0
        %v1466 = vadd.f32 0.0, %v1465
        %v1467 = vpop.f32.mrf.mxu0
        %v1468 = vpop.f32.mrf.mxu0
        %v1469 = vadd.f32 0.0, %v1468
        %v1470 = vpop.f32.mrf.mxu0
        %1471 = vmatprep.mubr.bf16.mxu0 0
        %1472 = vmatmul.mubr.bf16.gmra.mxu0 %v1420
        %v1473 = vpop.f32.mrf.mxu0
        %v1474 = vadd.f32 0.0, %v1473
        %v1475 = vpop.f32.mrf.mxu0
        %v1476 = vpop.f32.mrf.mxu0
        %v1477 = vadd.f32 0.0, %v1476
        %v1478 = vpop.f32.mrf.mxu0
        %1479 = vmatprep.mubr.bf16.mxu0 0
        %1480 = vmatmul.mubr.bf16.gmra.mxu0 %v1423
        %v1481 = vpop.f32.mrf.mxu0
        %v1482 = vadd.f32 0.0, %v1481
        %v1483 = vpop.f32.mrf.mxu0
        %v1484 = vpop.f32.mrf.mxu0
        %v1485 = vadd.f32 0.0, %v1484
        %v1486 = vpop.f32.mrf.mxu0
        %1487 = vmatprep.mubr.bf16.mxu0 0
        %1488 = vmatmul.mubr.bf16.gmra.mxu0 %v1426
        %v1489 = vpop.f32.mrf.mxu0
        %v1490 = vadd.f32 0.0, %v1489
        %v1491 = vpop.f32.mrf.mxu0
        %v1492 = vpop.f32.mrf.mxu0
        %v1493 = vadd.f32 0.0, %v1492
        %v1494 = vpop.f32.mrf.mxu0
        %1495 = vdwg.mxu0
        %v1496 = vadd.f32 %v1393, %v1466
        %v1497 = vadd.f32 %v1394, %v1469
        %v1498 = vadd.f32 %v1395, %v1474
        %v1499 = vadd.f32 %v1396, %v1477
        %v1500 = vadd.f32 %v1397, %v1482
        %v1501 = vadd.f32 %v1398, %v1485
        %v1502 = vadd.f32 %v1399, %v1490
        %v1503 = vadd.f32 %v1400, %v1493
        %v1504 = vld [vmem:[%s223 + $0x24] sm:$0x3]
        %s1505 = scalar_lea.vmem %s229, 44
        %v1506 = vld [vmem:[%s1505] sm:$0xf]
        %v1508 = vunpack.c.l.b16 %v1504
        %v1509 = vpack.c.b16 %v1508, %v1508
        %v1511 = vshrl.u32 %v1406, 16
        %v1513 = vrot.slane %v1511, 1
        %v1514 = vshll.u32 %v1406, 16
        %v1516 = vrot.slane %v1514, 2
        %v1517 = vor.u32 %v1513, %v1516
        %v1518 = vrot.slane %v1289, 1
        %v1519 = vrot.slane %v1285, 2
        %v1520 = vor.u32 %v1518, %v1519
        %v1521 = vsel %vm575, %v1517, %v1520
        %v1522 = vrot.slane %v1297, 1
        %v1523 = vrot.slane %v1293, 2
        %v1524 = vor.u32 %v1522, %v1523
        %v1525 = vsel %vm575, %v1520, %v1524
        %v1526 = vrot.slane %v1305, 1
        %v1527 = vrot.slane %v1301, 2
        %v1528 = vor.u32 %v1526, %v1527
        %v1529 = vsel %vm575, %v1524, %v1528
        %v1531 = vshrl.u32 %v1509, 16
        %v1533 = vrot.slane %v1531, 1
        %v1534 = vshll.u32 %v1509, 16
        %v1536 = vrot.slane %v1534, 2
        %v1537 = vor.u32 %v1533, %v1536
        %v1538 = vsel %vm575, %v1528, %v1537
        %v1540 = vsel %vm307, %v1521, 0
        %v1543 = vsel %vm307, %v1525, 0
        %v1546 = vsel %vm307, %v1529, 0
        %v1549 = vsel %vm307, %v1538, 0
        %v1552 = vsel %vm320, %v1506, 0
        %1554 = vmatprep.subr.bf16.mxu0 0
        %1555 = vmatpush1.bf16.msra.mxu0 0
        %1556 = vmatprep.subr.bf16.mxu0 0
        %1557 = vmatpush1.bf16.msra.mxu0 0
        %1558 = vmatprep.subr.bf16.mxu0 0
        %1559 = vmatpush1.bf16.msra.mxu0 0
        %1560 = vmatprep.subr.bf16.mxu0 0
        %1561 = vmatpush1.bf16.msra.mxu0 0
        %1562 = vmatprep.subr.bf16.mxu0 0
        %1563 = vmatpush1.bf16.msra.mxu0 0
        %1564 = vmatprep.subr.bf16.mxu0 0
        %1565 = vmatpush1.bf16.msra.mxu0 0
        %1566 = vmatprep.subr.bf16.mxu0 0
        %1567 = vmatpush1.bf16.msra.mxu0 0
        %1568 = vmatprep.subr.bf16.mxu0 0
        %1569 = vmatpush1.bf16.msra.mxu0 %v1552
        %1570 = vmatprep.subr.bf16.mxu0 0
        %1571 = vmatpush2.bf16.msra.mxu0 0
        %1572 = vmatprep.subr.bf16.mxu0 0
        %1573 = vmatpush2.bf16.msra.mxu0 0
        %1574 = vmatprep.subr.bf16.mxu0 0
        %1575 = vmatpush2.bf16.msra.mxu0 0
        %1576 = vmatprep.subr.bf16.mxu0 0
        %1577 = vmatpush2.bf16.msra.mxu0 0
        %1578 = vmatprep.subr.bf16.mxu0 0
        %1579 = vmatpush2.bf16.msra.mxu0 0
        %1580 = vmatprep.subr.bf16.mxu0 0
        %1581 = vmatpush2.bf16.msra.mxu0 0
        %1582 = vmatprep.subr.bf16.mxu0 0
        %1583 = vmatpush2.bf16.msra.mxu0 0
        %1584 = vmatprep.subr.bf16.mxu0 0
        %1585 = vmatpush2.bf16.msra.mxu0 0
        %1586 = vmatprep.mubr.bf16.mxu0 0
        %1587 = vmatmul.mubr.bf16.gmra.mxu0 %v1540
        %v1588 = vpop.f32.mrf.mxu0
        %v1589 = vadd.f32 0.0, %v1588
        %v1590 = vpop.f32.mrf.mxu0
        %v1591 = vpop.f32.mrf.mxu0
        %v1592 = vadd.f32 0.0, %v1591
        %v1593 = vpop.f32.mrf.mxu0
        %1594 = vmatprep.mubr.bf16.mxu0 0
        %1595 = vmatmul.mubr.bf16.gmra.mxu0 %v1543
        %v1596 = vpop.f32.mrf.mxu0
        %v1597 = vadd.f32 0.0, %v1596
        %v1598 = vpop.f32.mrf.mxu0
        %v1599 = vpop.f32.mrf.mxu0
        %v1600 = vadd.f32 0.0, %v1599
        %v1601 = vpop.f32.mrf.mxu0
        %1602 = vmatprep.mubr.bf16.mxu0 0
        %1603 = vmatmul.mubr.bf16.gmra.mxu0 %v1546
        %v1604 = vpop.f32.mrf.mxu0
        %v1605 = vadd.f32 0.0, %v1604
        %v1606 = vpop.f32.mrf.mxu0
        %v1607 = vpop.f32.mrf.mxu0
        %v1608 = vadd.f32 0.0, %v1607
        %v1609 = vpop.f32.mrf.mxu0
        %1610 = vmatprep.mubr.bf16.mxu0 0
        %1611 = vmatmul.mubr.bf16.gmra.mxu0 %v1549
        %v1612 = vpop.f32.mrf.mxu0
        %v1613 = vadd.f32 0.0, %v1612
        %v1614 = vpop.f32.mrf.mxu0
        %v1615 = vpop.f32.mrf.mxu0
        %v1616 = vadd.f32 0.0, %v1615
        %v1617 = vpop.f32.mrf.mxu0
        %1618 = vdwg.mxu0
        %v1619 = vadd.f32 %v1496, %v1589
        %v1620 = vadd.f32 %v1497, %v1592
        %v1621 = vadd.f32 %v1498, %v1597
        %v1622 = vadd.f32 %v1499, %v1600
        %v1623 = vadd.f32 %v1500, %v1605
        %v1624 = vadd.f32 %v1501, %v1608
        %v1625 = vadd.f32 %v1502, %v1613
        %v1626 = vadd.f32 %v1503, %v1616
        %v1627 = vld [vmem:[%s223 + $0x4] sm:$0xc]
        %s1628 = scalar_lea.vmem %s229, 48
        %v1629 = vld [vmem:[%s1628] sm:$0xf]
        %v1631 = vunpack.c.l.b16 %v1627
        %v1632 = vpack.c.b16 %v1264, %v1631
        %v1633 = vrot.slane %v1632, 2
        %v1634 = vrot.slane %v1273, 2
        %v1635 = vsel %vm699, %v1633, %v1634
        %v1636 = vrot.slane %v1274, 2
        %v1637 = vsel %vm699, %v1634, %v1636
        %v1638 = vrot.slane %v1275, 2
        %v1639 = vsel %vm699, %v1636, %v1638
        %v1640 = vrot.slane %v1509, 2
        %v1641 = vsel %vm699, %v1638, %v1640
        %v1643 = vsel %vm307, %v1635, 0
        %v1646 = vsel %vm307, %v1637, 0
        %v1649 = vsel %vm307, %v1639, 0
        %v1652 = vsel %vm307, %v1641, 0
        %v1655 = vsel %vm320, %v1629, 0
        %1657 = vmatprep.subr.bf16.mxu0 0
        %1658 = vmatpush1.bf16.msra.mxu0 0
        %1659 = vmatprep.subr.bf16.mxu0 0
        %1660 = vmatpush1.bf16.msra.mxu0 0
        %1661 = vmatprep.subr.bf16.mxu0 0
        %1662 = vmatpush1.bf16.msra.mxu0 0
        %1663 = vmatprep.subr.bf16.mxu0 0
        %1664 = vmatpush1.bf16.msra.mxu0 0
        %1665 = vmatprep.subr.bf16.mxu0 0
        %1666 = vmatpush1.bf16.msra.mxu0 0
        %1667 = vmatprep.subr.bf16.mxu0 0
        %1668 = vmatpush1.bf16.msra.mxu0 0
        %1669 = vmatprep.subr.bf16.mxu0 0
        %1670 = vmatpush1.bf16.msra.mxu0 0
        %1671 = vmatprep.subr.bf16.mxu0 0
        %1672 = vmatpush1.bf16.msra.mxu0 %v1655
        %1673 = vmatprep.subr.bf16.mxu0 0
        %1674 = vmatpush2.bf16.msra.mxu0 0
        %1675 = vmatprep.subr.bf16.mxu0 0
        %1676 = vmatpush2.bf16.msra.mxu0 0
        %1677 = vmatprep.subr.bf16.mxu0 0
        %1678 = vmatpush2.bf16.msra.mxu0 0
        %1679 = vmatprep.subr.bf16.mxu0 0
        %1680 = vmatpush2.bf16.msra.mxu0 0
        %1681 = vmatprep.subr.bf16.mxu0 0
        %1682 = vmatpush2.bf16.msra.mxu0 0
        %1683 = vmatprep.subr.bf16.mxu0 0
        %1684 = vmatpush2.bf16.msra.mxu0 0
        %1685 = vmatprep.subr.bf16.mxu0 0
        %1686 = vmatpush2.bf16.msra.mxu0 0
        %1687 = vmatprep.subr.bf16.mxu0 0
        %1688 = vmatpush2.bf16.msra.mxu0 0
        %1689 = vmatprep.mubr.bf16.mxu0 0
        %1690 = vmatmul.mubr.bf16.gmra.mxu0 %v1643
        %v1691 = vpop.f32.mrf.mxu0
        %v1692 = vadd.f32 0.0, %v1691
        %v1693 = vpop.f32.mrf.mxu0
        %v1694 = vpop.f32.mrf.mxu0
        %v1695 = vadd.f32 0.0, %v1694
        %v1696 = vpop.f32.mrf.mxu0
        %1697 = vmatprep.mubr.bf16.mxu0 0
        %1698 = vmatmul.mubr.bf16.gmra.mxu0 %v1646
        %v1699 = vpop.f32.mrf.mxu0
        %v1700 = vadd.f32 0.0, %v1699
        %v1701 = vpop.f32.mrf.mxu0
        %v1702 = vpop.f32.mrf.mxu0
        %v1703 = vadd.f32 0.0, %v1702
        %v1704 = vpop.f32.mrf.mxu0
        %1705 = vmatprep.mubr.bf16.mxu0 0
        %1706 = vmatmul.mubr.bf16.gmra.mxu0 %v1649
        %v1707 = vpop.f32.mrf.mxu0
        %v1708 = vadd.f32 0.0, %v1707
        %v1709 = vpop.f32.mrf.mxu0
        %v1710 = vpop.f32.mrf.mxu0
        %v1711 = vadd.f32 0.0, %v1710
        %v1712 = vpop.f32.mrf.mxu0
        %1713 = vmatprep.mubr.bf16.mxu0 0
        %1714 = vmatmul.mubr.bf16.gmra.mxu0 %v1652
        %v1715 = vpop.f32.mrf.mxu0
        %v1716 = vadd.f32 0.0, %v1715
        %v1717 = vpop.f32.mrf.mxu0
        %v1718 = vpop.f32.mrf.mxu0
        %v1719 = vadd.f32 0.0, %v1718
        %v1720 = vpop.f32.mrf.mxu0
        %1721 = vdwg.mxu0
        %v1722 = vadd.f32 %v1619, %v1692
        %v1723 = vadd.f32 %v1620, %v1695
        %v1724 = vadd.f32 %v1621, %v1700
        %v1725 = vadd.f32 %v1622, %v1703
        %v1726 = vadd.f32 %v1623, %v1708
        %v1727 = vadd.f32 %v1624, %v1711
        %v1728 = vadd.f32 %v1625, %v1716
        %v1729 = vadd.f32 %v1626, %v1719
        %v1730 = vld [vmem:[%s223 + $0x24] sm:$0x7]
        %s1731 = scalar_lea.vmem %s229, 52
        %v1732 = vld [vmem:[%s1731] sm:$0xf]
        %v1734 = vunpack.c.l.b16 %v1730
        %v1735 = vpack.c.b16 %v1734, %v1734
        %v1737 = vshrl.u32 %v1632, 16
        %v1739 = vrot.slane %v1737, 2
        %v1740 = vshll.u32 %v1632, 16
        %v1742 = vrot.slane %v1740, 3
        %v1743 = vor.u32 %v1739, %v1742
        %v1744 = vrot.slane %v1289, 2
        %v1745 = vrot.slane %v1285, 3
        %v1746 = vor.u32 %v1744, %v1745
        %v1747 = vsel %vm803, %v1743, %v1746
        %v1748 = vrot.slane %v1297, 2
        %v1749 = vrot.slane %v1293, 3
        %v1750 = vor.u32 %v1748, %v1749
        %v1751 = vsel %vm803, %v1746, %v1750
        %v1752 = vrot.slane %v1305, 2
        %v1753 = vrot.slane %v1301, 3
        %v1754 = vor.u32 %v1752, %v1753
        %v1755 = vsel %vm803, %v1750, %v1754
        %v1757 = vshrl.u32 %v1735, 16
        %v1759 = vrot.slane %v1757, 2
        %v1760 = vshll.u32 %v1735, 16
        %v1762 = vrot.slane %v1760, 3
        %v1763 = vor.u32 %v1759, %v1762
        %v1764 = vsel %vm803, %v1754, %v1763
        %v1766 = vsel %vm307, %v1747, 0
        %v1769 = vsel %vm307, %v1751, 0
        %v1772 = vsel %vm307, %v1755, 0
        %v1775 = vsel %vm307, %v1764, 0
        %v1778 = vsel %vm320, %v1732, 0
        %1780 = vmatprep.subr.bf16.mxu0 0
        %1781 = vmatpush1.bf16.msra.mxu0 0
        %1782 = vmatprep.subr.bf16.mxu0 0
        %1783 = vmatpush1.bf16.msra.mxu0 0
        %1784 = vmatprep.subr.bf16.mxu0 0
        %1785 = vmatpush1.bf16.msra.mxu0 0
        %1786 = vmatprep.subr.bf16.mxu0 0
        %1787 = vmatpush1.bf16.msra.mxu0 0
        %1788 = vmatprep.subr.bf16.mxu0 0
        %1789 = vmatpush1.bf16.msra.mxu0 0
        %1790 = vmatprep.subr.bf16.mxu0 0
        %1791 = vmatpush1.bf16.msra.mxu0 0
        %1792 = vmatprep.subr.bf16.mxu0 0
        %1793 = vmatpush1.bf16.msra.mxu0 0
        %1794 = vmatprep.subr.bf16.mxu0 0
        %1795 = vmatpush1.bf16.msra.mxu0 %v1778
        %1796 = vmatprep.subr.bf16.mxu0 0
        %1797 = vmatpush2.bf16.msra.mxu0 0
        %1798 = vmatprep.subr.bf16.mxu0 0
        %1799 = vmatpush2.bf16.msra.mxu0 0
        %1800 = vmatprep.subr.bf16.mxu0 0
        %1801 = vmatpush2.bf16.msra.mxu0 0
        %1802 = vmatprep.subr.bf16.mxu0 0
        %1803 = vmatpush2.bf16.msra.mxu0 0
        %1804 = vmatprep.subr.bf16.mxu0 0
        %1805 = vmatpush2.bf16.msra.mxu0 0
        %1806 = vmatprep.subr.bf16.mxu0 0
        %1807 = vmatpush2.bf16.msra.mxu0 0
        %1808 = vmatprep.subr.bf16.mxu0 0
        %1809 = vmatpush2.bf16.msra.mxu0 0
        %1810 = vmatprep.subr.bf16.mxu0 0
        %1811 = vmatpush2.bf16.msra.mxu0 0
        %1812 = vmatprep.mubr.bf16.mxu0 0
        %1813 = vmatmul.mubr.bf16.gmra.mxu0 %v1766
        %v1814 = vpop.f32.mrf.mxu0
        %v1815 = vadd.f32 0.0, %v1814
        %v1816 = vpop.f32.mrf.mxu0
        %v1817 = vpop.f32.mrf.mxu0
        %v1818 = vadd.f32 0.0, %v1817
        %v1819 = vpop.f32.mrf.mxu0
        %1820 = vmatprep.mubr.bf16.mxu0 0
        %1821 = vmatmul.mubr.bf16.gmra.mxu0 %v1769
        %v1822 = vpop.f32.mrf.mxu0
        %v1823 = vadd.f32 0.0, %v1822
        %v1824 = vpop.f32.mrf.mxu0
        %v1825 = vpop.f32.mrf.mxu0
        %v1826 = vadd.f32 0.0, %v1825
        %v1827 = vpop.f32.mrf.mxu0
        %1828 = vmatprep.mubr.bf16.mxu0 0
        %1829 = vmatmul.mubr.bf16.gmra.mxu0 %v1772
        %v1830 = vpop.f32.mrf.mxu0
        %v1831 = vadd.f32 0.0, %v1830
        %v1832 = vpop.f32.mrf.mxu0
        %v1833 = vpop.f32.mrf.mxu0
        %v1834 = vadd.f32 0.0, %v1833
        %v1835 = vpop.f32.mrf.mxu0
        %1836 = vmatprep.mubr.bf16.mxu0 0
        %1837 = vmatmul.mubr.bf16.gmra.mxu0 %v1775
        %v1838 = vpop.f32.mrf.mxu0
        %v1839 = vadd.f32 0.0, %v1838
        %v1840 = vpop.f32.mrf.mxu0
        %v1841 = vpop.f32.mrf.mxu0
        %v1842 = vadd.f32 0.0, %v1841
        %v1843 = vpop.f32.mrf.mxu0
        %1844 = vdwg.mxu0
        %v1845 = vadd.f32 %v1722, %v1815
        %v1846 = vadd.f32 %v1723, %v1818
        %v1847 = vadd.f32 %v1724, %v1823
        %v1848 = vadd.f32 %v1725, %v1826
        %v1849 = vadd.f32 %v1726, %v1831
        %v1850 = vadd.f32 %v1727, %v1834
        %v1851 = vadd.f32 %v1728, %v1839
        %v1852 = vadd.f32 %v1729, %v1842
        %v1853 = vld [vmem:[%s223 + $0x4] sm:$0x8]
        %s1854 = scalar_lea.vmem %s229, 56
        %v1855 = vld [vmem:[%s1854] sm:$0xf]
        %v1857 = vunpack.c.l.b16 %v1853
        %v1858 = vpack.c.b16 %v1264, %v1857
        %v1859 = vrot.slane %v1858, 3
        %v1860 = vrot.slane %v1273, 3
        %v1861 = vsel %vm927, %v1859, %v1860
        %v1862 = vrot.slane %v1274, 3
        %v1863 = vsel %vm927, %v1860, %v1862
        %v1864 = vrot.slane %v1275, 3
        %v1865 = vsel %vm927, %v1862, %v1864
        %v1866 = vrot.slane %v1735, 3
        %v1867 = vsel %vm927, %v1864, %v1866
        %v1869 = vsel %vm307, %v1861, 0
        %v1872 = vsel %vm307, %v1863, 0
        %v1875 = vsel %vm307, %v1865, 0
        %v1878 = vsel %vm307, %v1867, 0
        %v1881 = vsel %vm320, %v1855, 0
        %1883 = vmatprep.subr.bf16.mxu0 0
        %1884 = vmatpush1.bf16.msra.mxu0 0
        %1885 = vmatprep.subr.bf16.mxu0 0
        %1886 = vmatpush1.bf16.msra.mxu0 0
        %1887 = vmatprep.subr.bf16.mxu0 0
        %1888 = vmatpush1.bf16.msra.mxu0 0
        %1889 = vmatprep.subr.bf16.mxu0 0
        %1890 = vmatpush1.bf16.msra.mxu0 0
        %1891 = vmatprep.subr.bf16.mxu0 0
        %1892 = vmatpush1.bf16.msra.mxu0 0
        %1893 = vmatprep.subr.bf16.mxu0 0
        %1894 = vmatpush1.bf16.msra.mxu0 0
        %1895 = vmatprep.subr.bf16.mxu0 0
        %1896 = vmatpush1.bf16.msra.mxu0 0
        %1897 = vmatprep.subr.bf16.mxu0 0
        %1898 = vmatpush1.bf16.msra.mxu0 %v1881
        %1899 = vmatprep.subr.bf16.mxu0 0
        %1900 = vmatpush2.bf16.msra.mxu0 0
        %1901 = vmatprep.subr.bf16.mxu0 0
        %1902 = vmatpush2.bf16.msra.mxu0 0
        %1903 = vmatprep.subr.bf16.mxu0 0
        %1904 = vmatpush2.bf16.msra.mxu0 0
        %1905 = vmatprep.subr.bf16.mxu0 0
        %1906 = vmatpush2.bf16.msra.mxu0 0
        %1907 = vmatprep.subr.bf16.mxu0 0
        %1908 = vmatpush2.bf16.msra.mxu0 0
        %1909 = vmatprep.subr.bf16.mxu0 0
        %1910 = vmatpush2.bf16.msra.mxu0 0
        %1911 = vmatprep.subr.bf16.mxu0 0
        %1912 = vmatpush2.bf16.msra.mxu0 0
        %1913 = vmatprep.subr.bf16.mxu0 0
        %1914 = vmatpush2.bf16.msra.mxu0 0
        %1915 = vmatprep.mubr.bf16.mxu0 0
        %1916 = vmatmul.mubr.bf16.gmra.mxu0 %v1869
        %v1917 = vpop.f32.mrf.mxu0
        %v1918 = vadd.f32 0.0, %v1917
        %v1919 = vpop.f32.mrf.mxu0
        %v1920 = vpop.f32.mrf.mxu0
        %v1921 = vadd.f32 0.0, %v1920
        %v1922 = vpop.f32.mrf.mxu0
        %1923 = vmatprep.mubr.bf16.mxu0 0
        %1924 = vmatmul.mubr.bf16.gmra.mxu0 %v1872
        %v1925 = vpop.f32.mrf.mxu0
        %v1926 = vadd.f32 0.0, %v1925
        %v1927 = vpop.f32.mrf.mxu0
        %v1928 = vpop.f32.mrf.mxu0
        %v1929 = vadd.f32 0.0, %v1928
        %v1930 = vpop.f32.mrf.mxu0
        %1931 = vmatprep.mubr.bf16.mxu0 0
        %1932 = vmatmul.mubr.bf16.gmra.mxu0 %v1875
        %v1933 = vpop.f32.mrf.mxu0
        %v1934 = vadd.f32 0.0, %v1933
        %v1935 = vpop.f32.mrf.mxu0
        %v1936 = vpop.f32.mrf.mxu0
        %v1937 = vadd.f32 0.0, %v1936
        %v1938 = vpop.f32.mrf.mxu0
        %1939 = vmatprep.mubr.bf16.mxu0 0
        %1940 = vmatmul.mubr.bf16.gmra.mxu0 %v1878
        %v1941 = vpop.f32.mrf.mxu0
        %v1942 = vadd.f32 0.0, %v1941
        %v1943 = vpop.f32.mrf.mxu0
        %v1944 = vpop.f32.mrf.mxu0
        %v1945 = vadd.f32 0.0, %v1944
        %v1946 = vpop.f32.mrf.mxu0
        %1947 = vdwg.mxu0
        %v1948 = vadd.f32 %v1845, %v1918
        %v1949 = vadd.f32 %v1846, %v1921
        %v1950 = vadd.f32 %v1847, %v1926
        %v1951 = vadd.f32 %v1848, %v1929
        %v1952 = vadd.f32 %v1849, %v1934
        %v1953 = vadd.f32 %v1850, %v1937
        %v1954 = vadd.f32 %v1851, %v1942
        %v1955 = vadd.f32 %v1852, %v1945
        %v1956 = vld [vmem:[%s232] sm:$0x1]
        %v1958 = vlaneseq
        %v1959 = vshrl.u32 %v1958, 7
        %v1960 = vsub.s32 0, %v1959
        %v1961 = vrot.slane %v1956, %v1960
        %v1963 = vadd.f32 %v1948, %v1961
        %v1964 = vadd.f32 %v1949, %v1961
        %v1965 = vadd.f32 %v1950, %v1961
        %v1966 = vadd.f32 %v1951, %v1961
        %v1967 = vadd.f32 %v1952, %v1961
        %v1968 = vadd.f32 %v1953, %v1961
        %v1969 = vadd.f32 %v1954, %v1961
        %v1970 = vadd.f32 %v1955, %v1961
        %vm1971 = vcmp.gt.f32.partialorder %v1963, 0.0
        %vm1972 = vcmp.gt.f32.partialorder %v1964, 0.0
        %vm1973 = vcmp.gt.f32.partialorder %v1965, 0.0
        %vm1974 = vcmp.gt.f32.partialorder %v1966, 0.0
        %vm1975 = vcmp.gt.f32.partialorder %v1967, 0.0
        %vm1976 = vcmp.gt.f32.partialorder %v1968, 0.0
        %vm1977 = vcmp.gt.f32.partialorder %v1969, 0.0
        %vm1978 = vcmp.gt.f32.partialorder %v1970, 0.0
        %v1979 = vmul.f32 %v1963, 0.01
        %v1980 = vmul.f32 %v1964, 0.01
        %v1981 = vmul.f32 %v1965, 0.01
        %v1982 = vmul.f32 %v1966, 0.01
        %v1983 = vmul.f32 %v1967, 0.01
        %v1984 = vmul.f32 %v1968, 0.01
        %v1985 = vmul.f32 %v1969, 0.01
        %v1986 = vmul.f32 %v1970, 0.01
        %v1987 = vsel %vm1971, %v1963, %v1979
        %v1988 = vsel %vm1972, %v1964, %v1980
        %v1989 = vsel %vm1973, %v1965, %v1981
        %v1990 = vsel %vm1974, %v1966, %v1982
        %v1991 = vsel %vm1975, %v1967, %v1983
        %v1992 = vsel %vm1976, %v1968, %v1984
        %v1993 = vsel %vm1977, %v1969, %v1985
        %v1994 = vsel %vm1978, %v1970, %v1986
        %v1995 = vpack.c.bf16 %v1988, %v1987
        %v1996 = vpack.c.bf16 %v1990, %v1989
        %v1997 = vpack.c.bf16 %v1992, %v1991
        %v1998 = vpack.c.bf16 %v1994, %v1993
        %v2003 = vunpack.c.l.b16 %v1995
        %v2004 = vunpack.c.h.b16 %v1995
        %v2005 = vunpack.c.l.b16 %v1996
        %v2006 = vunpack.c.h.b16 %v1996
        %v2007 = vunpack.c.l.b16 %v1997
        %v2008 = vunpack.c.h.b16 %v1997
        %v2009 = vunpack.c.l.b16 %v1998
        %v2010 = vunpack.c.h.b16 %v1998
        %v2011 = vpack.c.b16 %v2003, %v2003
        %v2012 = vpack.c.b16 %v2004, %v2004
        %v2013 = vpack.c.b16 %v2005, %v2005
        %v2014 = vpack.c.b16 %v2006, %v2006
        %v2015 = vpack.c.b16 %v2007, %v2007
        %v2016 = vpack.c.b16 %v2008, %v2008
        %v2017 = vpack.c.b16 %v2009, %v2009
        %v2018 = vpack.c.b16 %v2010, %v2010
        %2027 = vst [vmem:[%s217] sm:$0xf] %v2011
        %2028 = vst [vmem:[%s217 + $0x4] sm:$0xf] %v2012
        %2029 = vst [vmem:[%s217 + $0x8] sm:$0xf] %v2013
        %2030 = vst [vmem:[%s217 + $0xc] sm:$0xf] %v2014
        %2031 = vst [vmem:[%s217 + $0x10] sm:$0xf] %v2015
        %2032 = vst [vmem:[%s217 + $0x14] sm:$0xf] %v2016
        %2033 = vst [vmem:[%s217 + $0x18] sm:$0xf] %v2017
        %2034 = vst [vmem:[%s217 + $0x1c] sm:$0xf] %v2018
        %s2035 = sand.u32 %s128, 1
        %s2036 = scalar_lea.sflag [#allocation3], %s2035
        %s2037 = sand.u32 %s128, 1
        %s2038 = smul.addr %s2037, 32
        %s2039 = scalar_lea.vmem [#allocation2], %s2038
        // Predicated region
        $region33: #{conv1d_pallas.1} parent=31 // pred_check
          %p2040 = pneg %p138
        $region34: #{conv1d_pallas.1} parent=31 // pred_check_branch
          %2042 = sbr.rel (%p2040) target = $region36
        $region35: #{conv1d_pallas.1} parent=31 // pred_region
          %s2043 = smul.u32 8, %s24
          %s2045 = ssub.s32 512, 512
          %2046 = vsyncadd %s2036, %s2045
          %s2047 = sadd.s32 %s23, %s2043
          %s2048 = smul.addr %s22, 8
          %s2049 = sadd.s32 %s2047, %s2048
          %s2050 = smul.addr %s2049, 64
          %s2051 = scalar_lea.hbm %s3, %s2050
          %s2052 = sshll.u32 %s2039, 4
          %s2053 = int_to_ptr.vmem [resolvable:$true] %s2052
          %2058 = dma.vmem_to_hbm [thread:$0]  %s2053, 512, %s2051, %s2036, 64, 64, 4
        $region36: #{conv1d_pallas.1} parent=31 // pred_fallthru
          _
      $region32: #{conv1d_pallas.1} parent=5 // pred_fallthru
        _
      %p2059 = scmp.le.s32.totalorder 2, %s12
      // Predicated region
      $region37: #{conv1d_pallas.1} parent=5 // pred_check
        %p2060 = pneg %p2059
      $region38: #{conv1d_pallas.1} parent=5 // pred_check_branch
        %2062 = sbr.rel (%p2060) target = $region40
      $region39: #{conv1d_pallas.1} parent=5 // pred_region
        %s2063 = ssub.s32 %s12, 2
        // Predicated region
        $region41: #{conv1d_pallas.1} parent=39 // pred_check
          %p2064 = pneg %p144
        $region42: #{conv1d_pallas.1} parent=39 // pred_check_branch
          %2066 = sbr.rel (%p2064) target = $region44
        $region43: #{conv1d_pallas.1} parent=39 // pred_region
          %s2067 = sand.u32 %s129, 1
          %s2068 = scalar_lea.sflag [#allocation3], %s2067
          %s2069 = sand.u32 %s129, 1
          %s2070 = smul.addr %s2069, 32
          %s2071 = scalar_lea.vmem [#allocation2], %s2070
          %2072 = dma.done %s2068, 512
        $region44: #{conv1d_pallas.1} parent=39 // pred_fallthru
          _
      $region40: #{conv1d_pallas.1} parent=5 // pred_fallthru
        _
    $region6: #{conv1d_pallas.1} parent=1 // loop_footer
      %s16 = sadd.s32 1, %s12
    $region7: #{conv1d_pallas.1} parent=1 // loop_footer_branch
      %11 = sbr.rel target = $region3
    $region8: #{conv1d_pallas.1} parent=1 // loop_exit
      _
    %2073 = vsyncpa [#allocation3], 1
    %s2074 = scalar_lea.sflag [#allocation3], 1
    %2075 = vsyncpa %s2074, 1

</llo_original>
